<compile_context>
chip_gen: v7x
topology: tpu7x:2x2x1
jax: 0.10.0
libtpu: 0.0.40
codegen_flags: <defaults>
</compile_context>

<pallas_src>
import functools

import jax
import jax.numpy as jnp
from jax.experimental import pallas as pl
from jax.experimental.pallas import tpu as pltpu


# ----------------------------------------------------------------------------
# Kernel 1: fused adaptive-avg-pool (to 1x1) + per-row sum-of-squares for the
#           four stacked feature maps.
# ----------------------------------------------------------------------------
def _pool_kernel(x_ref, pooled_ref, rowsq_ref, *, inv_hw):
    k = pl.program_id(2)

    @pl.when(k == 0)
    def _init():
        pooled_ref[...] = jnp.zeros_like(pooled_ref)
        rowsq_ref[...] = jnp.zeros_like(rowsq_ref)

    x = x_ref[...].astype(jnp.float32)                          # (1, tm, tk)
    pooled_ref[...] += jnp.sum(x, axis=-1, keepdims=True)       # (1, tm, 1)
    rowsq_ref[...] += jnp.sum(x * x, axis=-1, keepdims=True)    # (1, tm, 1)

    @pl.when(k == pl.num_programs(2) - 1)
    def _finalize():
        pooled_ref[...] = pooled_ref[...] * inv_hw


def _pick_tile(n, target, align):
    """Largest divisor of n that is <= target and a multiple of align
    (falls back to n itself => single full-extent block)."""
    if n <= target:
        return n
    t = (target // align) * align
    while t >= align:
        if n % t == 0:
            return t
        t -= align
    return n


def pool_and_sumsq(track, ref, pos, neg):
    """adaptive_avg_pool2d(.,1) + per-(b,c)-row sum(x^2) for 4 NCHW maps.

    Returns:
      pooled: (4, B*C, 1) f32  -- pooled embeddings for [track, ref, pos, neg]
      rowsq : (4, B*C, 1) f32  -- per (b,c) row sum of squares
    """
    B, C, H, W = track.shape
    BC, HW = B * C, H * W
    x = jnp.stack([track.reshape(BC, HW), ref.reshape(BC, HW),
                   pos.reshape(BC, HW), neg.reshape(BC, HW)], axis=0)

    tm = _pick_tile(BC, 256, 8)      # rows per block (sublane axis)
    tk = _pick_tile(HW, 2048, 128)   # spatial chunk (lane axis), <= ~2 MiB/blk
    grid = (4, BC // tm, HW // tk)

    pooled, rowsq = pl.pallas_call(
        functools.partial(_pool_kernel, inv_hw=1.0 / HW),
        out_shape=(jax.ShapeDtypeStruct((4, BC, 1), jnp.float32),
                   jax.ShapeDtypeStruct((4, BC, 1), jnp.float32)),
        grid_spec=pltpu.PrefetchScalarGridSpec(
            num_scalar_prefetch=0,
            grid=grid,
            in_specs=[pl.BlockSpec((1, tm, tk), lambda t, i, k: (t, i, k))],
            out_specs=(pl.BlockSpec((1, tm, 1), lambda t, i, k: (t, i, 0)),
                       pl.BlockSpec((1, tm, 1), lambda t, i, k: (t, i, 0)))),
        compiler_params=pltpu.CompilerParams(
            dimension_semantics=("parallel", "parallel", "arbitrary"),
            vmem_limit_bytes=32 * 1024 * 1024),
    )(x)
    return pooled, rowsq


# ----------------------------------------------------------------------------
# Kernel 2: focal + contrastive + direct triplet + batch-hard triplet + L2
#           + gating + weighted sum, fused into a single call.
# ----------------------------------------------------------------------------
def _fused_loss_kernel(scal_ref, labcol_ref, pemb_ref, rowsq_ref, out_ref, *,
                       margin, alpha, beta, gamma, focal_alpha, focal_gamma,
                       inv_feat_count):
    s = scal_ref[...]                                  # (3, B) f32
    logit = s[0:1, :]                                  # (1, B)
    sim = s[1:2, :]
    lab = s[2:3, :]                                    # float labels {0,1}

    # ---- focal classification loss (BCE-with-logits formulation) -----------
    bce = jnp.maximum(logit, 0.0) - logit * lab + jnp.log1p(jnp.exp(-jnp.abs(logit)))
    pt = jnp.exp(-bce)
    alpha_t = focal_alpha * lab + (1.0 - focal_alpha) * (1.0 - lab)
    omp = 1.0 - pt
    if focal_gamma == 2.0:
        focal_w = alpha_t * omp * omp
    else:
        focal_w = alpha_t * jnp.power(omp, focal_gamma)
    cls = jnp.mean(focal_w * bce, keepdims=True)       # (1, 1)

    # ---- contrastive loss on similarity scores ------------------------------
    dist = 1.0 - sim
    pos_l = lab * dist * dist
    hinge = jnp.maximum(margin - dist, 0.0)
    neg_l = (1.0 - lab) * hinge * hinge
    con = jnp.mean(pos_l + neg_l, keepdims=True)       # (1, 1)

    # ---- pooled embeddings (single VMEM-resident block) ---------------------
    emb_t = pemb_ref[0]                                # (B, C) track
    emb_r = pemb_ref[1]                                # (B, C) ref
    emb_p = pemb_ref[2]                                # (B, C) pos
    emb_n = pemb_ref[3]                                # (B, C) neg
    bsz = emb_t.shape[0]

    # ---- direct triplet loss (F.pairwise_distance semantics, eps=1e-6) ------
    dp = emb_t - emb_p + 1e-6
    dn = emb_t - emb_n + 1e-6
    pos_d = jnp.sqrt(jnp.sum(dp * dp, axis=-1, keepdims=True))    # (B, 1)
    neg_d = jnp.sqrt(jnp.sum(dn * dn, axis=-1, keepdims=True))
    tri = jnp.mean(jnp.maximum(pos_d - neg_d + margin, 0.0), keepdims=True)

    # ---- batch-hard triplet on the (track ++ ref) set, without concat -------
    # Row norms: column form via VPU lane reduce, row form via tiny ones-matmul
    # (no eye-mask (N,N) multiplies and no cross-sublane axis=0 reduce).
    dims = (((1,), (1,)), ((), ()))
    ones_c = jnp.ones((1, emb_t.shape[1]), dtype=jnp.float32)
    sq_t_c = jnp.sum(emb_t * emb_t, axis=-1, keepdims=True)       # (B, 1)
    sq_r_c = jnp.sum(emb_r * emb_r, axis=-1, keepdims=True)
    sq_t_r = jax.lax.dot_general(ones_c, emb_t * emb_t, dims,
                                 preferred_element_type=jnp.float32)  # (1, B)
    sq_r_r = jax.lax.dot_general(ones_c, emb_r * emb_r, dims,
                                 preferred_element_type=jnp.float32)

    g_tt = jax.lax.dot_general(emb_t, emb_t, dims, preferred_element_type=jnp.float32)
    g_tr = jax.lax.dot_general(emb_t, emb_r, dims, preferred_element_type=jnp.float32)
    g_rt = jax.lax.dot_general(emb_r, emb_t, dims, preferred_element_type=jnp.float32)
    g_rr = jax.lax.dot_general(emb_r, emb_r, dims, preferred_element_type=jnp.float32)

    ri = jax.lax.broadcasted_iota(jnp.int32, (bsz, bsz), 0)
    ci = jax.lax.broadcasted_iota(jnp.int32, (bsz, bsz), 1)
    off_diag = (ri != ci).astype(jnp.float32)

    d_tt = jnp.sqrt(jnp.maximum(sq_t_c + sq_t_r - 2.0 * g_tt, 0.0)) * off_diag
    d_tr = jnp.sqrt(jnp.maximum(sq_t_c + sq_r_r - 2.0 * g_tr, 0.0))
    d_rt = jnp.sqrt(jnp.maximum(sq_r_c + sq_t_r - 2.0 * g_rt, 0.0))
    d_rr = jnp.sqrt(jnp.maximum(sq_r_c + sq_r_r - 2.0 * g_rr, 0.0)) * off_diag

    lab_c = labcol_ref[...]                            # (B, 1)
    pos_m = (lab_c == lab).astype(jnp.float32)         # (B, B) — same for all blocks
    neg_m = 1.0 - pos_m

    big = 1e9

    def masked_min(d, m):
        md = d * m
        md = jnp.where(md == 0.0, big, md)             # torch: dist[dist==0] = 1e9
        return jnp.min(md, axis=-1, keepdims=True)     # (B, 1)

    hp_t = jnp.minimum(masked_min(d_tt, pos_m), masked_min(d_tr, pos_m))
    hn_t = jnp.minimum(masked_min(d_tt, neg_m), masked_min(d_tr, neg_m))
    hp_r = jnp.minimum(masked_min(d_rt, pos_m), masked_min(d_rr, pos_m))
    hn_r = jnp.minimum(masked_min(d_rt, neg_m), masked_min(d_rr, neg_m))

    trip_t = jnp.maximum(hp_t - hn_t + margin, 0.0)
    trip_r = jnp.maximum(hp_r - hn_r + margin, 0.0)
    val_t = jnp.logical_and(hp_t < 1e8, hn_t < 1e8).astype(jnp.float32)
    val_r = jnp.logical_and(hp_r < 1e8, hn_r < 1e8).astype(jnp.float32)
    cnt = jnp.sum(val_t, keepdims=True) + jnp.sum(val_r, keepdims=True)  # (1, 1)
    num = (jnp.sum(trip_t * val_t, keepdims=True)
           + jnp.sum(trip_r * val_r, keepdims=True))
    bh = jnp.where(cnt > 0.0, num / jnp.maximum(cnt, 1.0), 0.0)

    # ---- L2 regulariser: mean of squares of track / ref feature maps --------
    rs = rowsq_ref[...]                                # (4, B*C)
    l2t = jnp.sum(rs[0:1, :], axis=-1, keepdims=True) * inv_feat_count
    l2r = jnp.sum(rs[1:2, :], axis=-1, keepdims=True) * inv_feat_count
    l2 = 0.5 * (l2t + l2r)

    # ---- gate (needs at least one positive and one negative label) ----------
    has_pos = jnp.sum((lab == 1.0).astype(jnp.float32), keepdims=True) > 0.0
    has_neg = jnp.sum((lab == 0.0).astype(jnp.float32), keepdims=True) > 0.0
    gate = jnp.logical_and(has_pos, has_neg)

    extra = alpha * con + beta * bh + beta * tri + gamma * l2
    out_ref[...] = cls + jnp.where(gate, extra, jnp.zeros_like(extra))


def fused_losses(pemb, rowsq, logits, similarity, labels_f, *,
                 margin, alpha, beta, gamma, focal_alpha, focal_gamma,
                 inv_feat_count):
    bsz = labels_f.shape[0]
    scalars = jnp.stack([logits.reshape(-1).astype(jnp.float32),
                         similarity.reshape(-1).astype(jnp.float32),
                         labels_f], axis=0)                       # (3, B)
    lab_col = labels_f.reshape(bsz, 1)                            # (B, 1)
    nb, b, c = pemb.shape                                         # (4, B, C)
    out = pl.pallas_call(
        functools.partial(_fused_loss_kernel, margin=margin, alpha=alpha,
                          beta=beta, gamma=gamma, focal_alpha=focal_alpha,
                          focal_gamma=focal_gamma,
                          inv_feat_count=inv_feat_count),
        out_shape=jax.ShapeDtypeStruct((1, 1), jnp.float32),
        in_specs=[pl.BlockSpec((3, bsz), lambda: (0, 0)),
                  pl.BlockSpec((bsz, 1), lambda: (0, 0)),
                  pl.BlockSpec((nb, b, c), lambda: (0, 0, 0)),
                  pl.BlockSpec(rowsq.shape, lambda: (0, 0))],
        out_specs=pl.BlockSpec((1, 1), lambda: (0, 0)),
    )(scalars, lab_col, pemb, rowsq)
    return out[0, 0]


# ----------------------------------------------------------------------------
# Full EnhancedContrastiveLoss forward
# ----------------------------------------------------------------------------
def enhanced_contrastive_loss(logits, similarity, labels,
                              track_features, ref_features,
                              pos_features, neg_features,
                              margin=0.5, alpha=0.5, beta=0.3, gamma=0.2,
                              focal_alpha=0.25, focal_gamma=2.0):
    B, C, H, W = track_features.shape
    labels_f = labels.astype(jnp.float32)

    # adaptive_avg_pool2d(.,1) + sum(x^2) for all four maps — ONE pallas_call
    pooled_col, rowsq_col = pool_and_sumsq(track_features, ref_features,
                                           pos_features, neg_features)
    pemb = pooled_col.reshape(4, B, C)     # [track, ref, pos, neg] embeddings
    rsq = rowsq_col.reshape(4, B * C)      # per-(b,c) sum of squares

    # all loss terms + gating + weighted sum — ONE pallas_call
    return fused_losses(pemb, rsq, logits, similarity, labels_f,
                        margin=margin, alpha=alpha, beta=beta, gamma=gamma,
                        focal_alpha=focal_alpha, focal_gamma=focal_gamma,
                        inv_feat_count=1.0 / (B * C * H * W))


if __name__ == "__main__":
    key = jax.random.PRNGKey(0)
    B, C, H, W = 4, 4, 16, 16
    k1, k2, k3, k4, k5, k6 = jax.random.split(key, 6)

    logits = jax.random.normal(k1, (B, 1), dtype=jnp.float32)
    similarity = jnp.tanh(jax.random.normal(k2, (B,), dtype=jnp.float32))
    labels = jnp.array([1, 0, 1, 0], dtype=jnp.int32)
    track_features = jax.random.normal(k3, (B, C, H, W), dtype=jnp.float32)
    ref_features = jax.random.normal(k4, (B, C, H, W), dtype=jnp.float32)
    pos_features = jax.random.normal(k5, (B, C, H, W), dtype=jnp.float32)
    neg_features = jax.random.normal(k6, (B, C, H, W), dtype=jnp.float32)

    loss_fn = jax.jit(enhanced_contrastive_loss)
    loss = loss_fn(logits, similarity, labels,
                   track_features, ref_features, pos_features, neg_features)
    jax.block_until_ready(loss)
    print("KERNEL_OK")
</pallas_src>

<mosaic_0001>
module attributes {stable_mosaic.version = 11 : i64} {
  func.func @_pool_kernel(%arg0: i32, %arg1: i32, %arg2: i32, %arg3: memref<1x16x256xf32, #tpu.memory_space<vmem>>, %arg4: memref<1x16x1xf32, #tpu.memory_space<vmem>>, %arg5: memref<1x16x1xf32, #tpu.memory_space<vmem>>) attributes {dimension_semantics = [#tpu.dimension_semantics<parallel>, #tpu.dimension_semantics<parallel>, #tpu.dimension_semantics<arbitrary>], iteration_bounds = array<i64: 4, 1, 1>, scalar_prefetch = 0 : i64, scratch_operands = 0 : i64, tpu.core_type = #tpu.core_type<tc>, window_params = [{transform_indices = @transform_0, window_bounds = array<i64: 1, 16, 256>}, {transform_indices = @transform_1, window_bounds = array<i64: 1, 16, 1>}, {transform_indices = @transform_2, window_bounds = array<i64: 1, 16, 1>}]} {
    %c0_i32 = arith.constant 0 : i32
    %0 = arith.cmpi eq, %arg2, %c0_i32 : i32
    %1 = arith.extui %0 : i1 to i32
    %c0_i32_0 = arith.constant 0 : i32
    %2 = arith.cmpi ne, %1, %c0_i32_0 : i32
    scf.if %2 {
      %cst_18 = arith.constant 0.000000e+00 : f32
      %18 = vector.broadcast %cst_18 : f32 to vector<1x16x1xf32>
      %c0_19 = arith.constant 0 : index
      %c0_20 = arith.constant 0 : index
      %c0_21 = arith.constant 0 : index
      %19 = vector.load %arg4[%c0_19, %c0_20, %c0_21] : memref<1x16x1xf32, #tpu.memory_space<vmem>>, vector<1x16x1xf32>
      tpu.vector_store %arg4[%c0_19, %c0_20, %c0_21], %18 {strides = array<i32>} : memref<1x16x1xf32, #tpu.memory_space<vmem>>, vector<1x16x1xf32>,
      %cst_22 = arith.constant 0.000000e+00 : f32
      %20 = vector.broadcast %cst_22 : f32 to vector<1x16x1xf32>
      %c0_23 = arith.constant 0 : index
      %c0_24 = arith.constant 0 : index
      %c0_25 = arith.constant 0 : index
      %21 = vector.load %arg5[%c0_23, %c0_24, %c0_25] : memref<1x16x1xf32, #tpu.memory_space<vmem>>, vector<1x16x1xf32>
      tpu.vector_store %arg5[%c0_23, %c0_24, %c0_25], %20 {strides = array<i32>} : memref<1x16x1xf32, #tpu.memory_space<vmem>>, vector<1x16x1xf32>,
    } else {
    }
    %c0 = arith.constant 0 : index
    %c0_1 = arith.constant 0 : index
    %c0_2 = arith.constant 0 : index
    %3 = vector.load %arg3[%c0, %c0_1, %c0_2] : memref<1x16x256xf32, #tpu.memory_space<vmem>>, vector<1x16x256xf32>
    %c0_3 = arith.constant 0 : index
    %c0_4 = arith.constant 0 : index
    %c0_5 = arith.constant 0 : index
    %4 = vector.load %arg4[%c0_3, %c0_4, %c0_5] : memref<1x16x1xf32, #tpu.memory_space<vmem>>, vector<1x16x1xf32>
    %cst = arith.constant dense<0.000000e+00> : vector<1x16xf32>
    %5 = vector.multi_reduction <add>, %3, %cst [2] : vector<1x16x256xf32> to vector<1x16xf32>
    %6 = vector.shape_cast %5 : vector<1x16xf32> to vector<1x16x1xf32>
    %7 = arith.addf %4, %6 : vector<1x16x1xf32>
    %c0_6 = arith.constant 0 : index
    %c0_7 = arith.constant 0 : index
    %c0_8 = arith.constant 0 : index
    %8 = vector.load %arg4[%c0_6, %c0_7, %c0_8] : memref<1x16x1xf32, #tpu.memory_space<vmem>>, vector<1x16x1xf32>
    tpu.vector_store %arg4[%c0_6, %c0_7, %c0_8], %7 {strides = array<i32>} : memref<1x16x1xf32, #tpu.memory_space<vmem>>, vector<1x16x1xf32>,
    %c0_9 = arith.constant 0 : index
    %c0_10 = arith.constant 0 : index
    %c0_11 = arith.constant 0 : index
    %9 = vector.load %arg5[%c0_9, %c0_10, %c0_11] : memref<1x16x1xf32, #tpu.memory_space<vmem>>, vector<1x16x1xf32>
    %10 = arith.mulf %3, %3 : vector<1x16x256xf32>
    %cst_12 = arith.constant dense<0.000000e+00> : vector<1x16xf32>
    %11 = vector.multi_reduction <add>, %10, %cst_12 [2] : vector<1x16x256xf32> to vector<1x16xf32>
    %12 = vector.shape_cast %11 : vector<1x16xf32> to vector<1x16x1xf32>
    %13 = arith.addf %9, %12 : vector<1x16x1xf32>
    %c0_13 = arith.constant 0 : index
    %c0_14 = arith.constant 0 : index
    %c0_15 = arith.constant 0 : index
    %14 = vector.load %arg5[%c0_13, %c0_14, %c0_15] : memref<1x16x1xf32, #tpu.memory_space<vmem>>, vector<1x16x1xf32>
    tpu.vector_store %arg5[%c0_13, %c0_14, %c0_15], %13 {strides = array<i32>} : memref<1x16x1xf32, #tpu.memory_space<vmem>>, vector<1x16x1xf32>,
    %c0_i32_16 = arith.constant 0 : i32
    %15 = arith.cmpi eq, %arg2, %c0_i32_16 : i32
    %16 = arith.extui %15 : i1 to i32
    %c0_i32_17 = arith.constant 0 : i32
    %17 = arith.cmpi ne, %16, %c0_i32_17 : i32
    scf.if %17 {
      %c0_18 = arith.constant 0 : index
      %c0_19 = arith.constant 0 : index
      %c0_20 = arith.constant 0 : index
      %18 = vector.load %arg4[%c0_18, %c0_19, %c0_20] : memref<1x16x1xf32, #tpu.memory_space<vmem>>, vector<1x16x1xf32>
      %cst_21 = arith.constant 3.906250e-03 : f32
      %19 = vector.broadcast %cst_21 : f32 to vector<1x16x1xf32>
      %20 = arith.mulf %18, %19 : vector<1x16x1xf32>
      %c0_22 = arith.constant 0 : index
      %c0_23 = arith.constant 0 : index
      %c0_24 = arith.constant 0 : index
      %21 = vector.load %arg4[%c0_22, %c0_23, %c0_24] : memref<1x16x1xf32, #tpu.memory_space<vmem>>, vector<1x16x1xf32>
      tpu.vector_store %arg4[%c0_22, %c0_23, %c0_24], %20 {strides = array<i32>} : memref<1x16x1xf32, #tpu.memory_space<vmem>>, vector<1x16x1xf32>,
    } else {
    }
    return
  }
  func.func @transform_0(%arg0: i32, %arg1: i32, %arg2: i32) -> (i32, i32, i32) {
    %c0_i32 = arith.constant 0 : i32
    return %arg0, %arg1, %arg2 : i32, i32, i32
  }
  func.func @transform_1(%arg0: i32, %arg1: i32, %arg2: i32) -> (i32, i32, i32) {
    %c0_i32 = arith.constant 0 : i32
    %c0_i32_0 = arith.constant 0 : i32
    return %arg0, %arg1, %c0_i32 : i32, i32, i32
  }
  func.func @transform_2(%arg0: i32, %arg1: i32, %arg2: i32) -> (i32, i32, i32) {
    %c0_i32 = arith.constant 0 : i32
    %c0_i32_0 = arith.constant 0 : i32
    return %arg0, %arg1, %c0_i32 : i32, i32, i32
  }
}

module attributes {stable_mosaic.version = 11 : i64} {
  func.func @_fused_loss_kernel(%arg0: memref<3x4xf32, #tpu.memory_space<vmem>>, %arg1: memref<4x1xf32, #tpu.memory_space<vmem>>, %arg2: memref<4x4x4xf32, #tpu.memory_space<vmem>>, %arg3: memref<4x16xf32, #tpu.memory_space<vmem>>, %arg4: memref<1x1xf32, #tpu.memory_space<vmem>>) attributes {dimension_semantics = [], scalar_prefetch = 0 : i64, scratch_operands = 0 : i64, tpu.core_type = #tpu.core_type<tc>} {
    %c0 = arith.constant 0 : index
    %c0_0 = arith.constant 0 : index
    %0 = vector.load %arg0[%c0, %c0_0] : memref<3x4xf32, #tpu.memory_space<vmem>>, vector<3x4xf32>
    %1 = vector.extract_strided_slice %0 {offsets = [0, 0], sizes = [1, 4], strides = [1, 1]} : vector<3x4xf32> to vector<1x4xf32>
    %2 = vector.extract_strided_slice %0 {offsets = [1, 0], sizes = [1, 4], strides = [1, 1]} : vector<3x4xf32> to vector<1x4xf32>
    %3 = vector.extract_strided_slice %0 {offsets = [2, 0], sizes = [1, 4], strides = [1, 1]} : vector<3x4xf32> to vector<1x4xf32>
    %cst = arith.constant 0.000000e+00 : f32
    %4 = vector.broadcast %cst : f32 to vector<1x4xf32>
    %5 = arith.maximumf %1, %4 : vector<1x4xf32>
    %6 = arith.mulf %1, %3 : vector<1x4xf32>
    %7 = arith.subf %5, %6 : vector<1x4xf32>
    %8 = math.absf %1 : vector<1x4xf32>
    %cst_1 = arith.constant 0.000000e+00 : f32
    %9 = vector.broadcast %cst_1 : f32 to vector<1x4xf32>
    %10 = arith.subf %9, %8 : vector<1x4xf32>
    %11 = math.exp %10 : vector<1x4xf32>
    %12 = math.log1p %11 : vector<1x4xf32>
    %13 = arith.addf %7, %12 : vector<1x4xf32>
    %cst_2 = arith.constant 0.000000e+00 : f32
    %14 = vector.broadcast %cst_2 : f32 to vector<1x4xf32>
    %15 = arith.subf %14, %13 : vector<1x4xf32>
    %16 = math.exp %15 : vector<1x4xf32>
    %cst_3 = arith.constant 2.500000e-01 : f32
    %17 = vector.broadcast %cst_3 : f32 to vector<1x4xf32>
    %18 = arith.mulf %17, %3 : vector<1x4xf32>
    %cst_4 = arith.constant 1.000000e+00 : f32
    %19 = vector.broadcast %cst_4 : f32 to vector<1x4xf32>
    %20 = arith.subf %19, %3 : vector<1x4xf32>
    %cst_5 = arith.constant 7.500000e-01 : f32
    %21 = vector.broadcast %cst_5 : f32 to vector<1x4xf32>
    %22 = arith.mulf %21, %20 : vector<1x4xf32>
    %23 = arith.addf %18, %22 : vector<1x4xf32>
    %cst_6 = arith.constant 1.000000e+00 : f32
    %24 = vector.broadcast %cst_6 : f32 to vector<1x4xf32>
    %25 = arith.subf %24, %16 : vector<1x4xf32>
    %26 = arith.mulf %23, %25 : vector<1x4xf32>
    %27 = arith.mulf %26, %25 : vector<1x4xf32>
    %28 = arith.mulf %27, %13 : vector<1x4xf32>
    %29 = vector.shape_cast %28 : vector<1x4xf32> to vector<1x1x4xf32>
    %cst_7 = arith.constant dense<0.000000e+00> : vector<1xf32>
    %30 = vector.multi_reduction <add>, %29, %cst_7 [1, 2] : vector<1x1x4xf32> to vector<1xf32>
    %31 = vector.shape_cast %30 : vector<1xf32> to vector<1x1x1xf32>
    %32 = vector.extract %31[0, 0, 0] : f32 from vector<1x1x1xf32>
    %33 = vector.broadcast %32 : f32 to vector<1x1xf32>
    %cst_8 = arith.constant 4.000000e+00 : f32
    %34 = vector.broadcast %cst_8 : f32 to vector<1x1xf32>
    %35 = arith.divf %33, %34 : vector<1x1xf32>
    %cst_9 = arith.constant 1.000000e+00 : f32
    %36 = vector.broadcast %cst_9 : f32 to vector<1x4xf32>
    %37 = arith.subf %36, %2 : vector<1x4xf32>
    %38 = arith.mulf %3, %37 : vector<1x4xf32>
    %39 = arith.mulf %38, %37 : vector<1x4xf32>
    %cst_10 = arith.constant 5.000000e-01 : f32
    %40 = vector.broadcast %cst_10 : f32 to vector<1x4xf32>
    %41 = arith.subf %40, %37 : vector<1x4xf32>
    %cst_11 = arith.constant 0.000000e+00 : f32
    %42 = vector.broadcast %cst_11 : f32 to vector<1x4xf32>
    %43 = arith.maximumf %41, %42 : vector<1x4xf32>
    %cst_12 = arith.constant 1.000000e+00 : f32
    %44 = vector.broadcast %cst_12 : f32 to vector<1x4xf32>
    %45 = arith.subf %44, %3 : vector<1x4xf32>
    %46 = arith.mulf %45, %43 : vector<1x4xf32>
    %47 = arith.mulf %46, %43 : vector<1x4xf32>
    %48 = arith.addf %39, %47 : vector<1x4xf32>
    %49 = vector.shape_cast %48 : vector<1x4xf32> to vector<1x1x4xf32>
    %cst_13 = arith.constant dense<0.000000e+00> : vector<1xf32>
    %50 = vector.multi_reduction <add>, %49, %cst_13 [1, 2] : vector<1x1x4xf32> to vector<1xf32>
    %51 = vector.shape_cast %50 : vector<1xf32> to vector<1x1x1xf32>
    %52 = vector.extract %51[0, 0, 0] : f32 from vector<1x1x1xf32>
    %53 = vector.broadcast %52 : f32 to vector<1x1xf32>
    %cst_14 = arith.constant 4.000000e+00 : f32
    %54 = vector.broadcast %cst_14 : f32 to vector<1x1xf32>
    %55 = arith.divf %53, %54 : vector<1x1xf32>
    %c0_15 = arith.constant 0 : index
    %c0_16 = arith.constant 0 : index
    %c0_17 = arith.constant 0 : index
    %56 = vector.load %arg2[%c0_15, %c0_16, %c0_17] : memref<4x4x4xf32, #tpu.memory_space<vmem>>, vector<1x4x4xf32>
    %57 = vector.shape_cast %56 : vector<1x4x4xf32> to vector<4x4xf32>
    %c1 = arith.constant 1 : index
    %c0_18 = arith.constant 0 : index
    %c0_19 = arith.constant 0 : index
    %58 = vector.load %arg2[%c1, %c0_18, %c0_19] : memref<4x4x4xf32, #tpu.memory_space<vmem>>, vector<1x4x4xf32>
    %59 = vector.shape_cast %58 : vector<1x4x4xf32> to vector<4x4xf32>
    %c2 = arith.constant 2 : index
    %c0_20 = arith.constant 0 : index
    %c0_21 = arith.constant 0 : index
    %60 = vector.load %arg2[%c2, %c0_20, %c0_21] : memref<4x4x4xf32, #tpu.memory_space<vmem>>, vector<1x4x4xf32>
    %61 = vector.shape_cast %60 : vector<1x4x4xf32> to vector<4x4xf32>
    %c3 = arith.constant 3 : index
    %c0_22 = arith.constant 0 : index
    %c0_23 = arith.constant 0 : index
    %62 = vector.load %arg2[%c3, %c0_22, %c0_23] : memref<4x4x4xf32, #tpu.memory_space<vmem>>, vector<1x4x4xf32>
    %63 = vector.shape_cast %62 : vector<1x4x4xf32> to vector<4x4xf32>
    %64 = arith.subf %57, %61 : vector<4x4xf32>
    %cst_24 = arith.constant 9.99999997E-7 : f32
    %65 = vector.broadcast %cst_24 : f32 to vector<4x4xf32>
    %66 = arith.addf %64, %65 : vector<4x4xf32>
    %67 = arith.subf %57, %63 : vector<4x4xf32>
    %cst_25 = arith.constant 9.99999997E-7 : f32
    %68 = vector.broadcast %cst_25 : f32 to vector<4x4xf32>
    %69 = arith.addf %67, %68 : vector<4x4xf32>
    %70 = arith.mulf %66, %66 : vector<4x4xf32>
    %cst_26 = arith.constant dense<0.000000e+00> : vector<4xf32>
    %71 = vector.multi_reduction <add>, %70, %cst_26 [1] : vector<4x4xf32> to vector<4xf32>
    %72 = vector.shape_cast %71 : vector<4xf32> to vector<4x1xf32>
    %73 = math.sqrt %72 : vector<4x1xf32>
    %74 = arith.mulf %69, %69 : vector<4x4xf32>
    %cst_27 = arith.constant dense<0.000000e+00> : vector<4xf32>
    %75 = vector.multi_reduction <add>, %74, %cst_27 [1] : vector<4x4xf32> to vector<4xf32>
    %76 = vector.shape_cast %75 : vector<4xf32> to vector<4x1xf32>
    %77 = math.sqrt %76 : vector<4x1xf32>
    %78 = arith.subf %73, %77 : vector<4x1xf32>
    %cst_28 = arith.constant 5.000000e-01 : f32
    %79 = vector.broadcast %cst_28 : f32 to vector<4x1xf32>
    %80 = arith.addf %78, %79 : vector<4x1xf32>
    %cst_29 = arith.constant 0.000000e+00 : f32
    %81 = vector.broadcast %cst_29 : f32 to vector<4x1xf32>
    %82 = arith.maximumf %80, %81 : vector<4x1xf32>
    %83 = vector.shape_cast %82 : vector<4x1xf32> to vector<1x4x1xf32>
    %cst_30 = arith.constant dense<0.000000e+00> : vector<1xf32>
    %84 = vector.multi_reduction <add>, %83, %cst_30 [1, 2] : vector<1x4x1xf32> to vector<1xf32>
    %85 = vector.shape_cast %84 : vector<1xf32> to vector<1x1x1xf32>
    %86 = vector.extract %85[0, 0, 0] : f32 from vector<1x1x1xf32>
    %87 = vector.broadcast %86 : f32 to vector<1x1xf32>
    %cst_31 = arith.constant 4.000000e+00 : f32
    %88 = vector.broadcast %cst_31 : f32 to vector<1x1xf32>
    %89 = arith.divf %87, %88 : vector<1x1xf32>
    %cst_32 = arith.constant 1.000000e+00 : f32
    %90 = vector.broadcast %cst_32 : f32 to vector<1x4xf32>
    %91 = arith.mulf %57, %57 : vector<4x4xf32>
    %cst_33 = arith.constant dense<0.000000e+00> : vector<4xf32>
    %92 = vector.multi_reduction <add>, %91, %cst_33 [1] : vector<4x4xf32> to vector<4xf32>
    %93 = vector.shape_cast %92 : vector<4xf32> to vector<4x1xf32>
    %94 = arith.mulf %59, %59 : vector<4x4xf32>
    %cst_34 = arith.constant dense<0.000000e+00> : vector<4xf32>
    %95 = vector.multi_reduction <add>, %94, %cst_34 [1] : vector<4x4xf32> to vector<4xf32>
    %96 = vector.shape_cast %95 : vector<4xf32> to vector<4x1xf32>
    %97 = arith.mulf %57, %57 : vector<4x4xf32>
    %cst_35 = arith.constant dense<0.000000e+00> : vector<1x4xf32>
    %98 = tpu.matmul %90, %97, %cst_35 {dimension_numbers = #tpu.dot_dimension_numbers<[1], [1], [0], [0], [0, 0, 1, 0], [], []>} : vector<1x4xf32>, vector<4x4xf32>, vector<1x4xf32> -> vector<1x4xf32>
    %99 = arith.mulf %59, %59 : vector<4x4xf32>
    %cst_36 = arith.constant dense<0.000000e+00> : vector<1x4xf32>
    %100 = tpu.matmul %90, %99, %cst_36 {dimension_numbers = #tpu.dot_dimension_numbers<[1], [1], [0], [0], [0, 0, 1, 0], [], []>} : vector<1x4xf32>, vector<4x4xf32>, vector<1x4xf32> -> vector<1x4xf32>
    %cst_37 = arith.constant dense<0.000000e+00> : vector<4x4xf32>
    %101 = tpu.matmul %57, %57, %cst_37 {dimension_numbers = #tpu.dot_dimension_numbers<[1], [1], [0], [0], [0, 0, 1, 0], [], []>} : vector<4x4xf32>, vector<4x4xf32>, vector<4x4xf32> -> vector<4x4xf32>
    %cst_38 = arith.constant dense<0.000000e+00> : vector<4x4xf32>
    %102 = tpu.matmul %57, %59, %cst_38 {dimension_numbers = #tpu.dot_dimension_numbers<[1], [1], [0], [0], [0, 0, 1, 0], [], []>} : vector<4x4xf32>, vector<4x4xf32>, vector<4x4xf32> -> vector<4x4xf32>
    %cst_39 = arith.constant dense<0.000000e+00> : vector<4x4xf32>
    %103 = tpu.matmul %59, %57, %cst_39 {dimension_numbers = #tpu.dot_dimension_numbers<[1], [1], [0], [0], [0, 0, 1, 0], [], []>} : vector<4x4xf32>, vector<4x4xf32>, vector<4x4xf32> -> vector<4x4xf32>
    %cst_40 = arith.constant dense<0.000000e+00> : vector<4x4xf32>
    %104 = tpu.matmul %59, %59, %cst_40 {dimension_numbers = #tpu.dot_dimension_numbers<[1], [1], [0], [0], [0, 0, 1, 0], [], []>} : vector<4x4xf32>, vector<4x4xf32>, vector<4x4xf32> -> vector<4x4xf32>
    %105 = tpu.iota {dimensions = array<i32: 0>} : vector<4x4xi32>
    %106 = tpu.iota {dimensions = array<i32: 1>} : vector<4x4xi32>
    %107 = arith.cmpi ne, %105, %106 : vector<4x4xi32>
    %108 = arith.extui %107 : vector<4x4xi1> to vector<4x4xi32>
    %109 = arith.sitofp %108 : vector<4x4xi32> to vector<4x4xf32>
    %110 = vector.broadcast %93 : vector<4x1xf32> to vector<4x4xf32>
    %111 = vector.broadcast %98 : vector<1x4xf32> to vector<4x4xf32>
    %112 = arith.addf %110, %111 : vector<4x4xf32>
    %cst_41 = arith.constant 2.000000e+00 : f32
    %113 = vector.broadcast %cst_41 : f32 to vector<4x4xf32>
    %114 = arith.mulf %113, %101 : vector<4x4xf32>
    %115 = arith.subf %112, %114 : vector<4x4xf32>
    %cst_42 = arith.constant 0.000000e+00 : f32
    %116 = vector.broadcast %cst_42 : f32 to vector<4x4xf32>
    %117 = arith.maximumf %115, %116 : vector<4x4xf32>
    %118 = math.sqrt %117 : vector<4x4xf32>
    %119 = arith.mulf %118, %109 : vector<4x4xf32>
    %120 = vector.broadcast %93 : vector<4x1xf32> to vector<4x4xf32>
    %121 = vector.broadcast %100 : vector<1x4xf32> to vector<4x4xf32>
    %122 = arith.addf %120, %121 : vector<4x4xf32>
    %cst_43 = arith.constant 2.000000e+00 : f32
    %123 = vector.broadcast %cst_43 : f32 to vector<4x4xf32>
    %124 = arith.mulf %123, %102 : vector<4x4xf32>
    %125 = arith.subf %122, %124 : vector<4x4xf32>
    %cst_44 = arith.constant 0.000000e+00 : f32
    %126 = vector.broadcast %cst_44 : f32 to vector<4x4xf32>
    %127 = arith.maximumf %125, %126 : vector<4x4xf32>
    %128 = math.sqrt %127 : vector<4x4xf32>
    %129 = vector.broadcast %96 : vector<4x1xf32> to vector<4x4xf32>
    %130 = vector.broadcast %98 : vector<1x4xf32> to vector<4x4xf32>
    %131 = arith.addf %129, %130 : vector<4x4xf32>
    %cst_45 = arith.constant 2.000000e+00 : f32
    %132 = vector.broadcast %cst_45 : f32 to vector<4x4xf32>
    %133 = arith.mulf %132, %103 : vector<4x4xf32>
    %134 = arith.subf %131, %133 : vector<4x4xf32>
    %cst_46 = arith.constant 0.000000e+00 : f32
    %135 = vector.broadcast %cst_46 : f32 to vector<4x4xf32>
    %136 = arith.maximumf %134, %135 : vector<4x4xf32>
    %137 = math.sqrt %136 : vector<4x4xf32>
    %138 = vector.broadcast %96 : vector<4x1xf32> to vector<4x4xf32>
    %139 = vector.broadcast %100 : vector<1x4xf32> to vector<4x4xf32>
    %140 = arith.addf %138, %139 : vector<4x4xf32>
    %cst_47 = arith.constant 2.000000e+00 : f32
    %141 = vector.broadcast %cst_47 : f32 to vector<4x4xf32>
    %142 = arith.mulf %141, %104 : vector<4x4xf32>
    %143 = arith.subf %140, %142 : vector<4x4xf32>
    %cst_48 = arith.constant 0.000000e+00 : f32
    %144 = vector.broadcast %cst_48 : f32 to vector<4x4xf32>
    %145 = arith.maximumf %143, %144 : vector<4x4xf32>
    %146 = math.sqrt %145 : vector<4x4xf32>
    %147 = arith.mulf %146, %109 : vector<4x4xf32>
    %c0_49 = arith.constant 0 : index
    %c0_50 = arith.constant 0 : index
    %148 = vector.load %arg1[%c0_49, %c0_50] : memref<4x1xf32, #tpu.memory_space<vmem>>, vector<4x1xf32>
    %149 = vector.broadcast %148 : vector<4x1xf32> to vector<4x4xf32>
    %150 = vector.broadcast %3 : vector<1x4xf32> to vector<4x4xf32>
    %151 = arith.cmpf oeq, %149, %150 : vector<4x4xf32>
    %152 = arith.extui %151 : vector<4x4xi1> to vector<4x4xi32>
    %153 = arith.sitofp %152 : vector<4x4xi32> to vector<4x4xf32>
    %cst_51 = arith.constant 1.000000e+00 : f32
    %154 = vector.broadcast %cst_51 : f32 to vector<4x4xf32>
    %155 = arith.subf %154, %153 : vector<4x4xf32>
    %156 = arith.mulf %119, %153 : vector<4x4xf32>
    %cst_52 = arith.constant 0.000000e+00 : f32
    %157 = vector.broadcast %cst_52 : f32 to vector<4x4xf32>
    %158 = arith.cmpf oeq, %156, %157 : vector<4x4xf32>
    %cst_53 = arith.constant 1.000000e+09 : f32
    %159 = vector.broadcast %cst_53 : f32 to vector<4x4xf32>
    %160 = arith.select %158, %159, %156 : vector<4x4xi1>, vector<4x4xf32>
    %cst_54 = arith.constant dense<0x7F800000> : vector<4xf32>
    %161 = vector.multi_reduction <minimumf>, %160, %cst_54 [1] : vector<4x4xf32> to vector<4xf32>
    %162 = vector.shape_cast %161 : vector<4xf32> to vector<4x1xf32>
    %163 = arith.mulf %128, %153 : vector<4x4xf32>
    %cst_55 = arith.constant 0.000000e+00 : f32
    %164 = vector.broadcast %cst_55 : f32 to vector<4x4xf32>
    %165 = arith.cmpf oeq, %163, %164 : vector<4x4xf32>
    %cst_56 = arith.constant 1.000000e+09 : f32
    %166 = vector.broadcast %cst_56 : f32 to vector<4x4xf32>
    %167 = arith.select %165, %166, %163 : vector<4x4xi1>, vector<4x4xf32>
    %cst_57 = arith.constant dense<0x7F800000> : vector<4xf32>
    %168 = vector.multi_reduction <minimumf>, %167, %cst_57 [1] : vector<4x4xf32> to vector<4xf32>
    %169 = vector.shape_cast %168 : vector<4xf32> to vector<4x1xf32>
    %170 = arith.minimumf %162, %169 : vector<4x1xf32>
    %171 = arith.mulf %119, %155 : vector<4x4xf32>
    %cst_58 = arith.constant 0.000000e+00 : f32
    %172 = vector.broadcast %cst_58 : f32 to vector<4x4xf32>
    %173 = arith.cmpf oeq, %171, %172 : vector<4x4xf32>
    %cst_59 = arith.constant 1.000000e+09 : f32
    %174 = vector.broadcast %cst_59 : f32 to vector<4x4xf32>
    %175 = arith.select %173, %174, %171 : vector<4x4xi1>, vector<4x4xf32>
    %cst_60 = arith.constant dense<0x7F800000> : vector<4xf32>
    %176 = vector.multi_reduction <minimumf>, %175, %cst_60 [1] : vector<4x4xf32> to vector<4xf32>
    %177 = vector.shape_cast %176 : vector<4xf32> to vector<4x1xf32>
    %178 = arith.mulf %128, %155 : vector<4x4xf32>
    %cst_61 = arith.constant 0.000000e+00 : f32
    %179 = vector.broadcast %cst_61 : f32 to vector<4x4xf32>
    %180 = arith.cmpf oeq, %178, %179 : vector<4x4xf32>
    %cst_62 = arith.constant 1.000000e+09 : f32
    %181 = vector.broadcast %cst_62 : f32 to vector<4x4xf32>
    %182 = arith.select %180, %181, %178 : vector<4x4xi1>, vector<4x4xf32>
    %cst_63 = arith.constant dense<0x7F800000> : vector<4xf32>
    %183 = vector.multi_reduction <minimumf>, %182, %cst_63 [1] : vector<4x4xf32> to vector<4xf32>
    %184 = vector.shape_cast %183 : vector<4xf32> to vector<4x1xf32>
    %185 = arith.minimumf %177, %184 : vector<4x1xf32>
    %186 = arith.mulf %137, %153 : vector<4x4xf32>
    %cst_64 = arith.constant 0.000000e+00 : f32
    %187 = vector.broadcast %cst_64 : f32 to vector<4x4xf32>
    %188 = arith.cmpf oeq, %186, %187 : vector<4x4xf32>
    %cst_65 = arith.constant 1.000000e+09 : f32
    %189 = vector.broadcast %cst_65 : f32 to vector<4x4xf32>
    %190 = arith.select %188, %189, %186 : vector<4x4xi1>, vector<4x4xf32>
    %cst_66 = arith.constant dense<0x7F800000> : vector<4xf32>
    %191 = vector.multi_reduction <minimumf>, %190, %cst_66 [1] : vector<4x4xf32> to vector<4xf32>
    %192 = vector.shape_cast %191 : vector<4xf32> to vector<4x1xf32>
    %193 = arith.mulf %147, %153 : vector<4x4xf32>
    %cst_67 = arith.constant 0.000000e+00 : f32
    %194 = vector.broadcast %cst_67 : f32 to vector<4x4xf32>
    %195 = arith.cmpf oeq, %193, %194 : vector<4x4xf32>
    %cst_68 = arith.constant 1.000000e+09 : f32
    %196 = vector.broadcast %cst_68 : f32 to vector<4x4xf32>
    %197 = arith.select %195, %196, %193 : vector<4x4xi1>, vector<4x4xf32>
    %cst_69 = arith.constant dense<0x7F800000> : vector<4xf32>
    %198 = vector.multi_reduction <minimumf>, %197, %cst_69 [1] : vector<4x4xf32> to vector<4xf32>
    %199 = vector.shape_cast %198 : vector<4xf32> to vector<4x1xf32>
    %200 = arith.minimumf %192, %199 : vector<4x1xf32>
    %201 = arith.mulf %137, %155 : vector<4x4xf32>
    %cst_70 = arith.constant 0.000000e+00 : f32
    %202 = vector.broadcast %cst_70 : f32 to vector<4x4xf32>
    %203 = arith.cmpf oeq, %201, %202 : vector<4x4xf32>
    %cst_71 = arith.constant 1.000000e+09 : f32
    %204 = vector.broadcast %cst_71 : f32 to vector<4x4xf32>
    %205 = arith.select %203, %204, %201 : vector<4x4xi1>, vector<4x4xf32>
    %cst_72 = arith.constant dense<0x7F800000> : vector<4xf32>
    %206 = vector.multi_reduction <minimumf>, %205, %cst_72 [1] : vector<4x4xf32> to vector<4xf32>
    %207 = vector.shape_cast %206 : vector<4xf32> to vector<4x1xf32>
    %208 = arith.mulf %147, %155 : vector<4x4xf32>
    %cst_73 = arith.constant 0.000000e+00 : f32
    %209 = vector.broadcast %cst_73 : f32 to vector<4x4xf32>
    %210 = arith.cmpf oeq, %208, %209 : vector<4x4xf32>
    %cst_74 = arith.constant 1.000000e+09 : f32
    %211 = vector.broadcast %cst_74 : f32 to vector<4x4xf32>
    %212 = arith.select %210, %211, %208 : vector<4x4xi1>, vector<4x4xf32>
    %cst_75 = arith.constant dense<0x7F800000> : vector<4xf32>
    %213 = vector.multi_reduction <minimumf>, %212, %cst_75 [1] : vector<4x4xf32> to vector<4xf32>
    %214 = vector.shape_cast %213 : vector<4xf32> to vector<4x1xf32>
    %215 = arith.minimumf %207, %214 : vector<4x1xf32>
    %216 = arith.subf %170, %185 : vector<4x1xf32>
    %cst_76 = arith.constant 5.000000e-01 : f32
    %217 = vector.broadcast %cst_76 : f32 to vector<4x1xf32>
    %218 = arith.addf %216, %217 : vector<4x1xf32>
    %cst_77 = arith.constant 0.000000e+00 : f32
    %219 = vector.broadcast %cst_77 : f32 to vector<4x1xf32>
    %220 = arith.maximumf %218, %219 : vector<4x1xf32>
    %221 = arith.subf %200, %215 : vector<4x1xf32>
    %cst_78 = arith.constant 5.000000e-01 : f32
    %222 = vector.broadcast %cst_78 : f32 to vector<4x1xf32>
    %223 = arith.addf %221, %222 : vector<4x1xf32>
    %cst_79 = arith.constant 0.000000e+00 : f32
    %224 = vector.broadcast %cst_79 : f32 to vector<4x1xf32>
    %225 = arith.maximumf %223, %224 : vector<4x1xf32>
    %cst_80 = arith.constant 1.000000e+08 : f32
    %226 = vector.broadcast %cst_80 : f32 to vector<4x1xf32>
    %227 = arith.cmpf olt, %170, %226 : vector<4x1xf32>
    %cst_81 = arith.constant 1.000000e+08 : f32
    %228 = vector.broadcast %cst_81 : f32 to vector<4x1xf32>
    %229 = arith.cmpf olt, %185, %228 : vector<4x1xf32>
    %230 = arith.andi %227, %229 : vector<4x1xi1>
    %231 = arith.extui %230 : vector<4x1xi1> to vector<4x1xi32>
    %232 = arith.sitofp %231 : vector<4x1xi32> to vector<4x1xf32>
    %cst_82 = arith.constant 1.000000e+08 : f32
    %233 = vector.broadcast %cst_82 : f32 to vector<4x1xf32>
    %234 = arith.cmpf olt, %200, %233 : vector<4x1xf32>
    %cst_83 = arith.constant 1.000000e+08 : f32
    %235 = vector.broadcast %cst_83 : f32 to vector<4x1xf32>
    %236 = arith.cmpf olt, %215, %235 : vector<4x1xf32>
    %237 = arith.andi %234, %236 : vector<4x1xi1>
    %238 = arith.extui %237 : vector<4x1xi1> to vector<4x1xi32>
    %239 = arith.sitofp %238 : vector<4x1xi32> to vector<4x1xf32>
    %240 = vector.shape_cast %232 : vector<4x1xf32> to vector<1x4x1xf32>
    %cst_84 = arith.constant dense<0.000000e+00> : vector<1xf32>
    %241 = vector.multi_reduction <add>, %240, %cst_84 [1, 2] : vector<1x4x1xf32> to vector<1xf32>
    %242 = vector.shape_cast %241 : vector<1xf32> to vector<1x1x1xf32>
    %243 = vector.extract %242[0, 0, 0] : f32 from vector<1x1x1xf32>
    %244 = vector.broadcast %243 : f32 to vector<1x1xf32>
    %245 = vector.shape_cast %239 : vector<4x1xf32> to vector<1x4x1xf32>
    %cst_85 = arith.constant dense<0.000000e+00> : vector<1xf32>
    %246 = vector.multi_reduction <add>, %245, %cst_85 [1, 2] : vector<1x4x1xf32> to vector<1xf32>
    %247 = vector.shape_cast %246 : vector<1xf32> to vector<1x1x1xf32>
    %248 = vector.extract %247[0, 0, 0] : f32 from vector<1x1x1xf32>
    %249 = vector.broadcast %248 : f32 to vector<1x1xf32>
    %250 = arith.addf %244, %249 : vector<1x1xf32>
    %251 = arith.mulf %220, %232 : vector<4x1xf32>
    %252 = vector.shape_cast %251 : vector<4x1xf32> to vector<1x4x1xf32>
    %cst_86 = arith.constant dense<0.000000e+00> : vector<1xf32>
    %253 = vector.multi_reduction <add>, %252, %cst_86 [1, 2] : vector<1x4x1xf32> to vector<1xf32>
    %254 = vector.shape_cast %253 : vector<1xf32> to vector<1x1x1xf32>
    %255 = vector.extract %254[0, 0, 0] : f32 from vector<1x1x1xf32>
    %256 = vector.broadcast %255 : f32 to vector<1x1xf32>
    %257 = arith.mulf %225, %239 : vector<4x1xf32>
    %258 = vector.shape_cast %257 : vector<4x1xf32> to vector<1x4x1xf32>
    %cst_87 = arith.constant dense<0.000000e+00> : vector<1xf32>
    %259 = vector.multi_reduction <add>, %258, %cst_87 [1, 2] : vector<1x4x1xf32> to vector<1xf32>
    %260 = vector.shape_cast %259 : vector<1xf32> to vector<1x1x1xf32>
    %261 = vector.extract %260[0, 0, 0] : f32 from vector<1x1x1xf32>
    %262 = vector.broadcast %261 : f32 to vector<1x1xf32>
    %263 = arith.addf %256, %262 : vector<1x1xf32>
    %cst_88 = arith.constant 0.000000e+00 : f32
    %264 = vector.broadcast %cst_88 : f32 to vector<1x1xf32>
    %265 = arith.cmpf ogt, %250, %264 : vector<1x1xf32>
    %cst_89 = arith.constant 1.000000e+00 : f32
    %266 = vector.broadcast %cst_89 : f32 to vector<1x1xf32>
    %267 = arith.maximumf %250, %266 : vector<1x1xf32>
    %268 = arith.divf %263, %267 : vector<1x1xf32>
    %cst_90 = arith.constant 0.000000e+00 : f32
    %269 = vector.broadcast %cst_90 : f32 to vector<1x1xf32>
    %270 = arith.select %265, %268, %269 : vector<1x1xi1>, vector<1x1xf32>
    %c0_91 = arith.constant 0 : index
    %c0_92 = arith.constant 0 : index
    %271 = vector.load %arg3[%c0_91, %c0_92] : memref<4x16xf32, #tpu.memory_space<vmem>>, vector<4x16xf32>
    %272 = vector.extract_strided_slice %271 {offsets = [0, 0], sizes = [1, 16], strides = [1, 1]} : vector<4x16xf32> to vector<1x16xf32>
    %cst_93 = arith.constant dense<0.000000e+00> : vector<1xf32>
    %273 = vector.multi_reduction <add>, %272, %cst_93 [1] : vector<1x16xf32> to vector<1xf32>
    %274 = vector.shape_cast %273 : vector<1xf32> to vector<1x1xf32>
    %cst_94 = arith.constant 2.44140625E-4 : f32
    %275 = vector.broadcast %cst_94 : f32 to vector<1x1xf32>
    %276 = arith.mulf %274, %275 : vector<1x1xf32>
    %277 = vector.extract_strided_slice %271 {offsets = [1, 0], sizes = [1, 16], strides = [1, 1]} : vector<4x16xf32> to vector<1x16xf32>
    %cst_95 = arith.constant dense<0.000000e+00> : vector<1xf32>
    %278 = vector.multi_reduction <add>, %277, %cst_95 [1] : vector<1x16xf32> to vector<1xf32>
    %279 = vector.shape_cast %278 : vector<1xf32> to vector<1x1xf32>
    %cst_96 = arith.constant 2.44140625E-4 : f32
    %280 = vector.broadcast %cst_96 : f32 to vector<1x1xf32>
    %281 = arith.mulf %279, %280 : vector<1x1xf32>
    %282 = arith.addf %276, %281 : vector<1x1xf32>
    %cst_97 = arith.constant 5.000000e-01 : f32
    %283 = vector.broadcast %cst_97 : f32 to vector<1x1xf32>
    %284 = arith.mulf %283, %282 : vector<1x1xf32>
    %cst_98 = arith.constant 1.000000e+00 : f32
    %285 = vector.broadcast %cst_98 : f32 to vector<1x4xf32>
    %286 = arith.cmpf oeq, %3, %285 : vector<1x4xf32>
    %287 = arith.extui %286 : vector<1x4xi1> to vector<1x4xi32>
    %288 = arith.sitofp %287 : vector<1x4xi32> to vector<1x4xf32>
    %289 = vector.shape_cast %288 : vector<1x4xf32> to vector<1x1x4xf32>
    %cst_99 = arith.constant dense<0.000000e+00> : vector<1xf32>
    %290 = vector.multi_reduction <add>, %289, %cst_99 [1, 2] : vector<1x1x4xf32> to vector<1xf32>
    %291 = vector.shape_cast %290 : vector<1xf32> to vector<1x1x1xf32>
    %292 = vector.extract %291[0, 0, 0] : f32 from vector<1x1x1xf32>
    %293 = vector.broadcast %292 : f32 to vector<1x1xf32>
    %cst_100 = arith.constant 0.000000e+00 : f32
    %294 = vector.broadcast %cst_100 : f32 to vector<1x1xf32>
    %295 = arith.cmpf ogt, %293, %294 : vector<1x1xf32>
    %cst_101 = arith.constant 0.000000e+00 : f32
    %296 = vector.broadcast %cst_101 : f32 to vector<1x4xf32>
    %297 = arith.cmpf oeq, %3, %296 : vector<1x4xf32>
    %298 = arith.extui %297 : vector<1x4xi1> to vector<1x4xi32>
    %299 = arith.sitofp %298 : vector<1x4xi32> to vector<1x4xf32>
    %300 = vector.shape_cast %299 : vector<1x4xf32> to vector<1x1x4xf32>
    %cst_102 = arith.constant dense<0.000000e+00> : vector<1xf32>
    %301 = vector.multi_reduction <add>, %300, %cst_102 [1, 2] : vector<1x1x4xf32> to vector<1xf32>
    %302 = vector.shape_cast %301 : vector<1xf32> to vector<1x1x1xf32>
    %303 = vector.extract %302[0, 0, 0] : f32 from vector<1x1x1xf32>
    %304 = vector.broadcast %303 : f32 to vector<1x1xf32>
    %cst_103 = arith.constant 0.000000e+00 : f32
    %305 = vector.broadcast %cst_103 : f32 to vector<1x1xf32>
    %306 = arith.cmpf ogt, %304, %305 : vector<1x1xf32>
    %307 = arith.andi %295, %306 : vector<1x1xi1>
    %cst_104 = arith.constant 5.000000e-01 : f32
    %308 = vector.broadcast %cst_104 : f32 to vector<1x1xf32>
    %309 = arith.mulf %308, %55 : vector<1x1xf32>
    %cst_105 = arith.constant 3.000000e-01 : f32
    %310 = vector.broadcast %cst_105 : f32 to vector<1x1xf32>
    %311 = arith.mulf %310, %270 : vector<1x1xf32>
    %312 = arith.addf %309, %311 : vector<1x1xf32>
    %cst_106 = arith.constant 3.000000e-01 : f32
    %313 = vector.broadcast %cst_106 : f32 to vector<1x1xf32>
    %314 = arith.mulf %313, %89 : vector<1x1xf32>
    %315 = arith.addf %312, %314 : vector<1x1xf32>
    %cst_107 = arith.constant 2.000000e-01 : f32
    %316 = vector.broadcast %cst_107 : f32 to vector<1x1xf32>
    %317 = arith.mulf %316, %284 : vector<1x1xf32>
    %318 = arith.addf %315, %317 : vector<1x1xf32>
    %cst_108 = arith.constant 0.000000e+00 : f32
    %319 = vector.broadcast %cst_108 : f32 to vector<1x1xf32>
    %320 = arith.select %307, %318, %319 : vector<1x1xi1>, vector<1x1xf32>
    %321 = arith.addf %35, %320 : vector<1x1xf32>
    %c0_109 = arith.constant 0 : index
    %c0_110 = arith.constant 0 : index
    %322 = vector.load %arg4[%c0_109, %c0_110] : memref<1x1xf32, #tpu.memory_space<vmem>>, vector<1x1xf32>
    tpu.vector_store %arg4[%c0_109, %c0_110], %321 {strides = array<i32>} : memref<1x1xf32, #tpu.memory_space<vmem>>, vector<1x1xf32>,
    return
  }
}

</mosaic_0001>

<llo_original>
// kernel: enhanced_contrastive_loss.2
$region0: #{enhanced_contrastive_loss.2}
  #allocation0 [shape = 'u32[]', space=smem, size = 0x4, offset = 0x4, fixed_abs, tag = 'smem constant byte address 0x4 - core index']
  #allocation1 [shape = 'u32[144,128]{1,0:T(1,128)}', space=vmem, size = 0x12000, scoped, tag = 'internal scratch']
  %s0 = inlined_call_operand.vmem [shape: f32[4,16,256], index: 0, kind: input, shape index: {}]
  %s1 = inlined_call_operand.vmem [shape: f32[4,16,1], index: 1, kind: output, shape index: {0}]
  %s2 = inlined_call_operand.vmem [shape: f32[4,16,1], index: 2, kind: output, shape index: {1}]
  %3 = xla_tuple %s1, %s2
  %s4 = sld [smem:[#allocation0]]
  $region53: #{enhanced_contrastive_loss.2} parent=0
    _
  %s6 = ssub.s32 1, %s4
  %s7 = scalar_select 0, %s6, %s4
  loop: start=0, step=1, limit=6
  $region2: #{enhanced_contrastive_loss.2} parent=0 // loop_pre_header
    _
  $region3: #{enhanced_contrastive_loss.2} parent=0 // loop_header
    %s9 = sphi 0, %s13
    %p10 = scmp.ge.s32.totalorder %s9, 6
    %s16 = sphi 0, %s35
    %s17 = sphi 0, %s31
    %s18 = sphi 0, %s27
    %s19 = sphi 0, %s16
    %s20 = sphi 0, %s17
    %s21 = sphi 0, %s18
    %s22 = sphi 0, %s19
    %s23 = sphi 0, %s20
    %s24 = sphi 0, %s21
    %s42 = sphi 0, %s44
    %s45 = sphi 0, %s42
    %s46 = sphi 0, %s45
    %s62 = sphi 0, %s46
    %s70 = sphi 0, %s72
    %s73 = sphi 0, %s70
    %s74 = sphi 0, %s73
    %s90 = sphi 0, %s74
    %s98 = sphi 0, %s100
    %s101 = sphi 0, %s98
    %s102 = sphi 0, %s101
    %s118 = sphi 0, %s102
  $region4: #{enhanced_contrastive_loss.2} parent=0 // loop_header_branch
    %12 = sbr.rel (%p10) target = $region8
  $region5: #{enhanced_contrastive_loss.2} parent=0 // loop_body
    %s14 = ssub.s32 %s9, 1
    %s15 = ssub.s32 %s9, 2
    %s25 = sadd.s32 1, %s18
    %p26 = scmp.ge.s32.totalorder %s25, 1
    %s27 = scalar_select %p26, 0, %s25
    %s28 = sadd.s32 1, %s17
    %s29 = scalar_select %p26, %s28, %s17
    %p30 = scmp.ge.s32.totalorder %s29, 1
    %s31 = scalar_select %p30, 0, %s29
    %s32 = sadd.s32 1, %s16
    %s33 = scalar_select %p30, %s32, %s16
    %p34 = scmp.ge.s32.totalorder %s33, 4
    %s35 = scalar_select %p34, 0, %s33
    %s36 = ssub.s32 %s16, %s35
    %s37 = ssub.s32 %s17, %s31
    %s38 = sor.u32 %s36, %s37
    %s39 = ssub.s32 %s18, %s27
    %s40 = sor.u32 %s38, %s39
    %p41 = scmp.eq.s32.totalorder %s40, 0
    %s43 = sadd.s32 %s42, 1
    %s44 = scalar_select %p41, %s42, %s43
    %p47 = pneg %p41
    %p48 = scmp.eq.s32.totalorder %s9, 3
    %p49 = por %p47, %p48
    %p50 = scmp.ne.s32.totalorder %s42, %s45
    %p51 = scmp.eq.s32.totalorder %s9, 0
    %p52 = por %p50, %p51
    %p53 = scmp.ne.s32.totalorder %s42, %s45
    %p54 = scmp.eq.s32.totalorder %s14, 3
    %p55 = por %p53, %p54
    %p56 = scmp.ne.s32.totalorder %s45, %s46
    %p57 = scmp.eq.s32.totalorder %s14, 0
    %p58 = por %p56, %p57
    %p59 = scmp.ne.s32.totalorder %s45, %s46
    %p60 = scmp.eq.s32.totalorder %s15, 3
    %p61 = por %p59, %p60
    %p63 = scmp.ne.s32.totalorder %s46, %s62
    %p64 = scmp.eq.s32.totalorder %s15, 0
    %p65 = por %p63, %p64
    %s66 = ssub.s32 %s16, %s35
    %s67 = ssub.s32 %s17, %s31
    %s68 = sor.u32 %s66, %s67
    %p69 = scmp.eq.s32.totalorder %s68, 0
    %s71 = sadd.s32 %s70, 1
    %s72 = scalar_select %p69, %s70, %s71
    %p75 = pneg %p69
    %p76 = scmp.eq.s32.totalorder %s9, 3
    %p77 = por %p75, %p76
    %p78 = scmp.ne.s32.totalorder %s70, %s73
    %p79 = scmp.eq.s32.totalorder %s9, 0
    %p80 = por %p78, %p79
    %p81 = scmp.ne.s32.totalorder %s70, %s73
    %p82 = scmp.eq.s32.totalorder %s14, 3
    %p83 = por %p81, %p82
    %p84 = scmp.ne.s32.totalorder %s73, %s74
    %p85 = scmp.eq.s32.totalorder %s14, 0
    %p86 = por %p84, %p85
    %p87 = scmp.ne.s32.totalorder %s73, %s74
    %p88 = scmp.eq.s32.totalorder %s15, 3
    %p89 = por %p87, %p88
    %p91 = scmp.ne.s32.totalorder %s74, %s90
    %p92 = scmp.eq.s32.totalorder %s15, 0
    %p93 = por %p91, %p92
    %s94 = ssub.s32 %s16, %s35
    %s95 = ssub.s32 %s17, %s31
    %s96 = sor.u32 %s94, %s95
    %p97 = scmp.eq.s32.totalorder %s96, 0
    %s99 = sadd.s32 %s98, 1
    %s100 = scalar_select %p97, %s98, %s99
    %p103 = pneg %p97
    %p104 = scmp.eq.s32.totalorder %s9, 3
    %p105 = por %p103, %p104
    %p106 = scmp.ne.s32.totalorder %s98, %s101
    %p107 = scmp.eq.s32.totalorder %s9, 0
    %p108 = por %p106, %p107
    %p109 = scmp.ne.s32.totalorder %s98, %s101
    %p110 = scmp.eq.s32.totalorder %s14, 3
    %p111 = por %p109, %p110
    %p112 = scmp.ne.s32.totalorder %s101, %s102
    %p113 = scmp.eq.s32.totalorder %s14, 0
    %p114 = por %p112, %p113
    %p115 = scmp.ne.s32.totalorder %s101, %s102
    %p116 = scmp.eq.s32.totalorder %s15, 3
    %p117 = por %p115, %p116
    %p119 = scmp.ne.s32.totalorder %s102, %s118
    %p120 = scmp.eq.s32.totalorder %s15, 0
    %p121 = por %p119, %p120
    %p122 = scmp.le.s32.totalorder 1, %s9
    %p123 = scmp.lt.s32.totalorder %s9, 5
    %p124 = pnand %p122, %p123
    %p125 = pneg %p124
    // Predicated region
    $region9: #{enhanced_contrastive_loss.2} parent=5 // pred_check
      _
    $region10: #{enhanced_contrastive_loss.2} parent=5 // pred_check_branch
      %127 = sbr.rel (%p124) target = $region12
    $region11: #{enhanced_contrastive_loss.2} parent=5 // pred_region
      %s128 = ssub.s32 %s9, 1
    $region12: #{enhanced_contrastive_loss.2} parent=5 // pred_fallthru
      _
    %p129 = scmp.lt.s32.totalorder %s9, 4
    // Predicated region
    $region13: #{enhanced_contrastive_loss.2} parent=5 // pred_check
      %p130 = pneg %p129
    $region14: #{enhanced_contrastive_loss.2} parent=5 // pred_check_branch
      %132 = sbr.rel (%p130) target = $region16
    $region15: #{enhanced_contrastive_loss.2} parent=5 // pred_region
      // Predicated region
      $region17: #{enhanced_contrastive_loss.2} parent=15 // pred_check
        %p133 = pneg %p52
      $region18: #{enhanced_contrastive_loss.2} parent=15 // pred_check_branch
        %135 = sbr.rel (%p133) target = $region20
      $region19: #{enhanced_contrastive_loss.2} parent=15 // pred_region
        %s136 = smul.u32 2, %s17
        %s137 = smul.u32 2, %s18
        %p138 = scmp.lt.s32.totalorder %s16, 3
        %s139 = scalar_select %p138, %s16, 3
        %p140 = scmp.lt.s32.totalorder %s136, 1
        %s141 = scalar_select %p140, %s136, 1
        %p142 = scmp.lt.s32.totalorder %s137, 1
        %s143 = scalar_select %p142, %s137, 1
        %s144 = smul.addr %s141, 2
        %s145 = sadd.s32 %s143, %s144
        %s146 = smul.addr %s139, 4
        %s147 = sadd.s32 %s145, %s146
        %s148 = smul.addr %s147, 8
        %s149 = scalar_lea.vmem %s0, %s148
        %s150 = smul.u32 2, %s17
        %s151 = smul.u32 2, %s18
      $region20: #{enhanced_contrastive_loss.2} parent=15 // pred_fallthru
        _
    $region16: #{enhanced_contrastive_loss.2} parent=5 // pred_fallthru
      _
    %p152 = scmp.le.s32.totalorder 1, %s9
    %p153 = scmp.lt.s32.totalorder %s9, 5
    %p154 = pnand %p152, %p153
    %p155 = pneg %p154
    // Predicated region
    $region21: #{enhanced_contrastive_loss.2} parent=5 // pred_check
      _
    $region22: #{enhanced_contrastive_loss.2} parent=5 // pred_check_branch
      %157 = sbr.rel (%p154) target = $region24
    $region23: #{enhanced_contrastive_loss.2} parent=5 // pred_region
      %s158 = ssub.s32 %s9, 1
      %s159 = smul.u32 2, %s20
      %s160 = smul.u32 2, %s21
      %p161 = scmp.lt.s32.totalorder %s19, 3
      %s162 = scalar_select %p161, %s19, 3
      %p163 = scmp.lt.s32.totalorder %s159, 1
      %s164 = scalar_select %p163, %s159, 1
      %p165 = scmp.lt.s32.totalorder %s160, 1
      %s166 = scalar_select %p165, %s160, 1
      %s167 = smul.addr %s164, 2
      %s168 = sadd.s32 %s166, %s167
      %s169 = smul.addr %s162, 4
      %s170 = sadd.s32 %s168, %s169
      %s171 = smul.addr %s170, 8
      %s172 = scalar_lea.vmem %s0, %s171
      %p173 = pneg %p58
      %p174 = pneg %p55
      %p175 = pneg %p86
      %p176 = pneg %p83
      %s177 = smul.u32 2, %s20
      %p178 = scmp.lt.s32.totalorder %s19, 3
      %s179 = scalar_select %p178, %s19, 3
      %p180 = scmp.lt.s32.totalorder %s177, 1
      %s181 = scalar_select %p180, %s177, 1
      %s182 = smul.addr %s179, 2
      %s183 = sadd.s32 %s181, %s182
      %s184 = smul.addr %s183, 8
      %s185 = scalar_lea.vmem %s1, %s184
      %p186 = pneg %p114
      %p187 = pneg %p111
      %s188 = smul.u32 2, %s20
      %p189 = scmp.lt.s32.totalorder %s19, 3
      %s190 = scalar_select %p189, %s19, 3
      %p191 = scmp.lt.s32.totalorder %s188, 1
      %s192 = scalar_select %p191, %s188, 1
      %s193 = smul.addr %s190, 2
      %s194 = sadd.s32 %s192, %s193
      %s195 = smul.addr %s194, 8
      %s196 = scalar_lea.vmem %s2, %s195
      %s197 = smul.u32 2, %s20
      %s198 = smul.u32 2, %s21
      %p199 = scmp.lt.s32.totalorder %s19, 3
      %s200 = scalar_select %p199, %s19, 3
      %p201 = scmp.lt.s32.totalorder %s197, 1
      %s202 = scalar_select %p201, %s197, 1
      %p203 = scmp.lt.s32.totalorder %s198, 1
      %s204 = scalar_select %p203, %s198, 1
      %s205 = smul.addr %s202, 2
      %s206 = sadd.s32 %s204, %s205
      %s207 = smul.addr %s200, 4
      %s208 = sadd.s32 %s206, %s207
      %s209 = smul.addr %s208, 8
      %s210 = scalar_lea.vmem %s0, %s209
      %s211 = smul.u32 2, %s20
      %s212 = smul.u32 2, %s21
      %s213 = smul.u32 2, %s20
      %p214 = scmp.lt.s32.totalorder %s19, 3
      %s215 = scalar_select %p214, %s19, 3
      %p216 = scmp.lt.s32.totalorder %s213, 1
      %s217 = scalar_select %p216, %s213, 1
      %s218 = smul.addr %s215, 2
      %s219 = sadd.s32 %s217, %s218
      %s220 = smul.addr %s219, 8
      %s221 = scalar_lea.vmem %s1, %s220
      %s222 = smul.u32 2, %s20
      %s223 = smul.u32 2, %s20
      %p224 = scmp.lt.s32.totalorder %s19, 3
      %s225 = scalar_select %p224, %s19, 3
      %p226 = scmp.lt.s32.totalorder %s223, 1
      %s227 = scalar_select %p226, %s223, 1
      %s228 = smul.addr %s225, 2
      %s229 = sadd.s32 %s227, %s228
      %s230 = smul.addr %s229, 8
      %s231 = scalar_lea.vmem %s2, %s230
      %s232 = smul.u32 2, %s20
      %p233 = scmp.eq.s32.totalorder %s21, 0
      // Predicated region
      $region25: #{enhanced_contrastive_loss.2} parent=23 // pred_check
        %p234 = pneg %p233
      $region26: #{enhanced_contrastive_loss.2} parent=23 // pred_check_branch
        %236 = sbr.rel (%p234) target = $region28
      $region27: #{enhanced_contrastive_loss.2} parent=23 // pred_region
        %vm237 = vcmask 7168
        %238 = vst.msk [vmem:[%s221] sm:$0xff] %vm237, 0.0
        %239 = vst.msk [vmem:[%s221 + $0x8] sm:$0xff] %vm237, 0.0
        %240 = vst.msk [vmem:[%s231] sm:$0xff] %vm237, 0.0
        %241 = vst.msk [vmem:[%s231 + $0x8] sm:$0xff] %vm237, 0.0
      $region28: #{enhanced_contrastive_loss.2} parent=23 // pred_fallthru
        _
      %v242 = vld [vmem:[%s210] sm:$0xff]
      %v243 = vld [vmem:[%s210 + $0x8] sm:$0xff]
      %v244 = vld [vmem:[%s210 + $0x10] sm:$0xff]
      %v245 = vld [vmem:[%s210 + $0x18] sm:$0xff]
      %v246 = vld [vmem:[%s221] sm:$0xff]
      %v247 = vld [vmem:[%s221 + $0x8] sm:$0xff]
      %v248 = vadd.f32 %v242, %v243
      %249 = vadd.xlane.f32.xlu0 %v248
      %v250 = vpop.xlane.xlu0 %249
      %v251 = vadd.f32 %v244, %v245
      %252 = vadd.xlane.f32.xlu0 %v251
      %v253 = vpop.xlane.xlu0 %252
      %v254 = vadd.f32 %v246, %v250
      %v255 = vadd.f32 %v247, %v253
      %vm256 = vcmask 7168
      %257 = vst.msk [vmem:[%s221] sm:$0xff] %vm256, %v254
      %258 = vst.msk [vmem:[%s221 + $0x8] sm:$0xff] %vm256, %v255
      %v259 = vld [vmem:[%s231] sm:$0xff]
      %v260 = vld [vmem:[%s231 + $0x8] sm:$0xff]
      %v261 = vmul.f32 %v242, %v242
      %v262 = vmul.f32 %v243, %v243
      %v263 = vmul.f32 %v244, %v244
      %v264 = vmul.f32 %v245, %v245
      %v265 = vadd.f32 %v261, %v262
      %266 = vadd.xlane.f32.xlu0 %v265
      %v267 = vpop.xlane.xlu0 %266
      %v268 = vadd.f32 %v263, %v264
      %269 = vadd.xlane.f32.xlu0 %v268
      %v270 = vpop.xlane.xlu0 %269
      %v271 = vadd.f32 %v259, %v267
      %v272 = vadd.f32 %v260, %v270
      %273 = vst.msk [vmem:[%s231] sm:$0xff] %vm256, %v271
      %274 = vst.msk [vmem:[%s231 + $0x8] sm:$0xff] %vm256, %v272
      // Predicated region
      $region29: #{enhanced_contrastive_loss.2} parent=23 // pred_check
        %p275 = pneg %p233
      $region30: #{enhanced_contrastive_loss.2} parent=23 // pred_check_branch
        %277 = sbr.rel (%p275) target = $region32
      $region31: #{enhanced_contrastive_loss.2} parent=23 // pred_region
        %v278 = vld [vmem:[%s221] sm:$0xff]
        %v279 = vld [vmem:[%s221 + $0x8] sm:$0xff]
        %v280 = vmul.f32 %v278, 0.00390625
        %v281 = vmul.f32 %v279, 0.00390625
        %282 = vst.msk [vmem:[%s221] sm:$0xff] %vm256, %v280
        %283 = vst.msk [vmem:[%s221 + $0x8] sm:$0xff] %vm256, %v281
      $region32: #{enhanced_contrastive_loss.2} parent=23 // pred_fallthru
        _
      %s284 = smul.u32 2, %s20
      %p285 = scmp.lt.s32.totalorder %s19, 3
      %s286 = scalar_select %p285, %s19, 3
      %p287 = scmp.lt.s32.totalorder %s284, 1
      %s288 = scalar_select %p287, %s284, 1
      %s289 = smul.addr %s286, 2
      %s290 = sadd.s32 %s288, %s289
      %s291 = smul.addr %s290, 8
      %s292 = scalar_lea.vmem %s1, %s291
      %s293 = smul.u32 2, %s20
      %p294 = scmp.lt.s32.totalorder %s19, 3
      %s295 = scalar_select %p294, %s19, 3
      %p296 = scmp.lt.s32.totalorder %s293, 1
      %s297 = scalar_select %p296, %s293, 1
      %s298 = smul.addr %s295, 2
      %s299 = sadd.s32 %s297, %s298
      %s300 = smul.addr %s299, 8
      %s301 = scalar_lea.vmem %s2, %s300
      // Predicated region
      $region33: #{enhanced_contrastive_loss.2} parent=23 // pred_check
        %p302 = pneg %p83
      $region34: #{enhanced_contrastive_loss.2} parent=23 // pred_check_branch
        %304 = sbr.rel (%p302) target = $region36
      $region35: #{enhanced_contrastive_loss.2} parent=23 // pred_region
        %s305 = smul.u32 2, %s20
      $region36: #{enhanced_contrastive_loss.2} parent=23 // pred_fallthru
        _
      // Predicated region
      $region37: #{enhanced_contrastive_loss.2} parent=23 // pred_check
        %p306 = pneg %p111
      $region38: #{enhanced_contrastive_loss.2} parent=23 // pred_check_branch
        %308 = sbr.rel (%p306) target = $region40
      $region39: #{enhanced_contrastive_loss.2} parent=23 // pred_region
        %s309 = smul.u32 2, %s20
      $region40: #{enhanced_contrastive_loss.2} parent=23 // pred_fallthru
        _
    $region24: #{enhanced_contrastive_loss.2} parent=5 // pred_fallthru
      _
    %p310 = scmp.le.s32.totalorder 2, %s9
    // Predicated region
    $region41: #{enhanced_contrastive_loss.2} parent=5 // pred_check
      %p311 = pneg %p310
    $region42: #{enhanced_contrastive_loss.2} parent=5 // pred_check_branch
      %313 = sbr.rel (%p311) target = $region44
    $region43: #{enhanced_contrastive_loss.2} parent=5 // pred_region
      %s314 = ssub.s32 %s9, 2
      // Predicated region
      $region45: #{enhanced_contrastive_loss.2} parent=43 // pred_check
        %p315 = pneg %p89
      $region46: #{enhanced_contrastive_loss.2} parent=43 // pred_check_branch
        %317 = sbr.rel (%p315) target = $region48
      $region47: #{enhanced_contrastive_loss.2} parent=43 // pred_region
        %s318 = smul.u32 2, %s23
        %p319 = scmp.lt.s32.totalorder %s22, 3
        %s320 = scalar_select %p319, %s22, 3
        %p321 = scmp.lt.s32.totalorder %s318, 1
        %s322 = scalar_select %p321, %s318, 1
        %s323 = smul.addr %s320, 2
        %s324 = sadd.s32 %s322, %s323
        %s325 = smul.addr %s324, 8
        %s326 = scalar_lea.vmem %s1, %s325
      $region48: #{enhanced_contrastive_loss.2} parent=43 // pred_fallthru
        _
      // Predicated region
      $region49: #{enhanced_contrastive_loss.2} parent=43 // pred_check
        %p327 = pneg %p117
      $region50: #{enhanced_contrastive_loss.2} parent=43 // pred_check_branch
        %329 = sbr.rel (%p327) target = $region52
      $region51: #{enhanced_contrastive_loss.2} parent=43 // pred_region
        %s330 = smul.u32 2, %s23
        %p331 = scmp.lt.s32.totalorder %s22, 3
        %s332 = scalar_select %p331, %s22, 3
        %p333 = scmp.lt.s32.totalorder %s330, 1
        %s334 = scalar_select %p333, %s330, 1
        %s335 = smul.addr %s332, 2
        %s336 = sadd.s32 %s334, %s335
        %s337 = smul.addr %s336, 8
        %s338 = scalar_lea.vmem %s2, %s337
      $region52: #{enhanced_contrastive_loss.2} parent=43 // pred_fallthru
        _
    $region44: #{enhanced_contrastive_loss.2} parent=5 // pred_fallthru
      _
  $region6: #{enhanced_contrastive_loss.2} parent=0 // loop_footer
    %s13 = sadd.s32 1, %s9
  $region7: #{enhanced_contrastive_loss.2} parent=0 // loop_footer_branch
    %8 = sbr.rel target = $region3
  $region8: #{enhanced_contrastive_loss.2} parent=0 // loop_exit
    _

// kernel: enhanced_contrastive_loss.3
$region0: #{enhanced_contrastive_loss.3}
  #allocation0 [shape = 'u32[]', space=smem, size = 0x4, offset = 0x4, fixed_abs, tag = 'smem constant byte address 0x4 - core index']
  #allocation1 [shape = 'u32[144,128]{1,0:T(1,128)}', space=vmem, size = 0x12000, scoped, tag = 'internal scratch']
  %s0 = inlined_call_operand.vmem [shape: f32[3,4], index: 0, kind: input, shape index: {}]
  %s1 = inlined_call_operand.vmem [shape: f32[4,1], index: 1, kind: input, shape index: {}]
  %s2 = inlined_call_operand.vmem [shape: f32[4,4,4], index: 2, kind: input, shape index: {}]
  %s3 = inlined_call_operand.vmem [shape: f32[4,16], index: 3, kind: input, shape index: {}]
  %s4 = inlined_call_operand.hbm [shape: f32[1,1], index: 4, kind: output, shape index: {}]
  %s5 = sld [smem:[#allocation0]]
  $region26: #{enhanced_contrastive_loss.3} parent=0
    _
  %s7 = ssub.s32 1, %s5
  %s8 = scalar_select 0, %s7, %s5
  $region1: #{enhanced_contrastive_loss.3} parent=0
    #allocation2 [shape = 'u8[512]{0}', space=vmem, size = 0x400, scoped, tag = 'output window, operand 0, single buffered']
    #allocation3 [shape = 's32[1]{0}', space=sflag, size = 0x4, scoped, tag = 'scoped memory for enhanced_contrastive_loss.3']
    %9 = vsyncpa [#allocation3], 0
    // Predicated region
    $region2: #{enhanced_contrastive_loss.3} parent=1 // pred_check
      _
    $region3: #{enhanced_contrastive_loss.3} parent=1 // pred_check_branch
      %11 = sbr.rel (0) target = $region5
    $region4: #{enhanced_contrastive_loss.3} parent=1 // pred_region
      _
    $region5: #{enhanced_contrastive_loss.3} parent=1 // pred_fallthru
      _
    // Predicated region
    $region6: #{enhanced_contrastive_loss.3} parent=1 // pred_check
      _
    $region7: #{enhanced_contrastive_loss.3} parent=1 // pred_check_branch
      %13 = sbr.rel (0) target = $region9
    $region8: #{enhanced_contrastive_loss.3} parent=1 // pred_region
      _
    $region9: #{enhanced_contrastive_loss.3} parent=1 // pred_fallthru
      _
    // Predicated region
    $region10: #{enhanced_contrastive_loss.3} parent=1 // pred_check
      _
    $region11: #{enhanced_contrastive_loss.3} parent=1 // pred_check_branch
      %15 = sbr.rel (0) target = $region13
    $region12: #{enhanced_contrastive_loss.3} parent=1 // pred_region
      _
    $region13: #{enhanced_contrastive_loss.3} parent=1 // pred_fallthru
      _
    // Predicated region
    $region14: #{enhanced_contrastive_loss.3} parent=1 // pred_check
      _
    $region15: #{enhanced_contrastive_loss.3} parent=1 // pred_check_branch
      %17 = sbr.rel (0) target = $region17
    $region16: #{enhanced_contrastive_loss.3} parent=1 // pred_region
      _
    $region17: #{enhanced_contrastive_loss.3} parent=1 // pred_fallthru
      _
    %v18 = vld [vmem:[%s0] sm:$0x7]
    %v19 = vmax.f32 %v18, 0.0
    %v21 = vrot.slane %v18, 2
    %v23 = vmul.f32 %v18, %v21
    %v24 = vsub.f32 %v19, %v23
    %v25 = vand.u32 2147483647, %v18
    %v26 = vsub.f32 0.0, %v25
    %v27 = vmul.f32 %v26, 1.442695
    %v28 = vpow.pop %v27
    %v29 = vadd.f32 %v28, 1.0
    %v30 = vlog2.pop %v29
    %v31 = vmul.f32 %v30, 0.6931472
    %v32 = vmul.f32 -0.5, %v28
    %v33 = vadd.f32 %v32, 1.0
    %v34 = vmul.f32 %v33, %v28
    %v35 = vand.u32 2147483647, %v28
    %vm36 = vcmp.lt.f32.partialorder %v35, 0.0004427343
    %v37 = vsel %vm36, %v34, %v31
    %v38 = vadd.f32 %v24, %v37
    %v39 = vsub.f32 0.0, %v38
    %v40 = vmul.f32 %v39, 1.442695
    %v41 = vpow.pop %v40
    %v42 = vmul.f32 %v18, 0.25
    %v43 = vsub.f32 1.0, %v18
    %v44 = vmul.f32 %v43, 0.75
    %v45 = vadd.f32 %v42, %v44
    %v46 = vsub.f32 1.0, %v41
    %v48 = vrot.slane %v46, 6
    %v50 = vmul.f32 %v45, %v48
    %v51 = vmul.f32 %v50, %v48
    %v53 = vrot.slane %v38, 6
    %v55 = vmul.f32 %v51, %v53
    %v57 = vrot.slane %v55, 2
    %vm59 = vcmask 24576
    %v60 = vsel %vm59, %v57, 0.0
    %61 = vadd.xlane.f32.xlu0 %v60
    %v62 = vpop.xlane.xlu0 %61
    %v63 = vrot.slane %v62, 4
    %v64 = vadd.f32 %v62, %v63
    %v65 = vrot.slane %v64, 2
    %v66 = vadd.f32 %v64, %v65
    %v67 = vrot.slane %v66, 1
    %v68 = vadd.f32 %v66, %v67
    %s69 = vtos %v68
    %v70 = vstv %s69
    %v71 = vrcp.pop 4.0
    %v72 = vmul.f32 %v70, %v71
    %v74 = vrot.slane %v43, 7
    %v76 = vmul.f32 %v18, %v74
    %v77 = vmul.f32 %v76, %v74
    %v78 = vsub.f32 0.5, %v43
    %v79 = vmax.f32 %v78, 0.0
    %v81 = vrot.slane %v79, 7
    %v83 = vmul.f32 %v43, %v81
    %v84 = vmul.f32 %v83, %v81
    %v85 = vadd.f32 %v77, %v84
    %v87 = vrot.slane %v85, 2
    %v89 = vsel %vm59, %v87, 0.0
    %90 = vadd.xlane.f32.xlu0 %v89
    %v91 = vpop.xlane.xlu0 %90
    %v92 = vrot.slane %v91, 4
    %v93 = vadd.f32 %v91, %v92
    %v94 = vrot.slane %v93, 2
    %v95 = vadd.f32 %v93, %v94
    %v96 = vrot.slane %v95, 1
    %v97 = vadd.f32 %v95, %v96
    %s98 = vtos %v97
    %v99 = vstv %s98
    %v100 = vmul.f32 %v99, %v71
    %v101 = vld [vmem:[%s2] sm:$0xf]
    %s102 = scalar_lea.vmem %s2, 4
    %v103 = vld [vmem:[%s102] sm:$0xf]
    %s104 = scalar_lea.vmem %s2, 8
    %v105 = vld [vmem:[%s104] sm:$0xf]
    %s106 = scalar_lea.vmem %s2, 12
    %v107 = vld [vmem:[%s106] sm:$0xf]
    %v108 = vsub.f32 %v101, %v105
    %v109 = vadd.f32 %v108, 1e-06
    %v110 = vsub.f32 %v101, %v107
    %v111 = vadd.f32 %v110, 1e-06
    %v112 = vmul.f32 %v109, %v109
    %vm113 = vcmask 27648
    %v114 = vsel %vm113, %v112, 0.0
    %115 = vadd.xlane.f32.xlu0 %v114
    %v116 = vpop.xlane.xlu0 %115
    %v117 = vrsqrt.pop %v116
    %v118 = vmul.f32 %v116, %v117
    %vm119 = vcmp.eq.f32.partialorder %v116, inf
    %v120 = vsel %vm119, %v116, %v118
    %vm121 = vcmp.eq.f32.partialorder %v116, 0.0
    %v122 = vand.u32 %v116, 2147483648
    %v123 = vsel %vm121, %v122, %v120
    %v124 = vmul.f32 %v111, %v111
    %v125 = vsel %vm113, %v124, 0.0
    %126 = vadd.xlane.f32.xlu0 %v125
    %v127 = vpop.xlane.xlu0 %126
    %v128 = vrsqrt.pop %v127
    %v129 = vmul.f32 %v127, %v128
    %vm130 = vcmp.eq.f32.partialorder %v127, inf
    %v131 = vsel %vm130, %v127, %v129
    %vm132 = vcmp.eq.f32.partialorder %v127, 0.0
    %v133 = vand.u32 %v127, 2147483648
    %v134 = vsel %vm132, %v133, %v131
    %v135 = vsub.f32 %v123, %v134
    %v136 = vadd.f32 %v135, 0.5
    %v137 = vmax.f32 %v136, 0.0
    %vm138 = vcmask 3072
    %v139 = vsel %vm138, %v137, 0.0
    %140 = vadd.xlane.f32.xlu0 %v139
    %v141 = vpop.xlane.xlu0 %140
    %v142 = vrot.slane %v141, 4
    %v143 = vadd.f32 %v141, %v142
    %v144 = vrot.slane %v143, 2
    %v145 = vadd.f32 %v143, %v144
    %v146 = vrot.slane %v145, 1
    %v147 = vadd.f32 %v145, %v146
    %s148 = vtos %v147
    %v149 = vstv %s148
    %v150 = vmul.f32 %v149, %v71
    %v151 = vmul.f32 %v101, %v101
    %v152 = vsel %vm113, %v151, 0.0
    %153 = vadd.xlane.f32.xlu0 %v152
    %v154 = vpop.xlane.xlu0 %153
    %v155 = vmul.f32 %v103, %v103
    %v156 = vsel %vm113, %v155, 0.0
    %157 = vadd.xlane.f32.xlu0 %v156
    %v158 = vpop.xlane.xlu0 %157
    %vm159 = vcmask 31744
    %v161 = vsel %vm159, 1.0, 0
    %v164 = vsel %vm159, %v151, 0
    %166 = vmatprep.subr.mxu0 0.0
    %167 = vmatpush1.xpose.msra.mxu0 %v164
    %168 = vmatprep.subr.mxu0 0.0
    %169 = vmatpush1.xpose.msra.mxu0 0.0
    %170 = vmatprep.subr.mxu0 0.0
    %171 = vmatpush1.xpose.msra.mxu0 0.0
    %172 = vmatprep.subr.mxu0 0.0
    %173 = vmatpush1.xpose.msra.mxu0 0.0
    %174 = vmatprep.subr.mxu0 0.0
    %175 = vmatpush1.xpose.msra.mxu0 0.0
    %176 = vmatprep.subr.mxu0 0.0
    %177 = vmatpush1.xpose.msra.mxu0 0.0
    %178 = vmatprep.subr.mxu0 0.0
    %179 = vmatpush1.xpose.msra.mxu0 0.0
    %180 = vmatprep.subr.mxu0 0.0
    %181 = vmatpush1.xpose.msra.mxu0 0.0
    %182 = vmatprep.subr.mxu0 0.0
    %183 = vmatpush1.xpose.msra.mxu0 0.0
    %184 = vmatprep.subr.mxu0 0.0
    %185 = vmatpush1.xpose.msra.mxu0 0.0
    %186 = vmatprep.subr.mxu0 0.0
    %187 = vmatpush1.xpose.msra.mxu0 0.0
    %188 = vmatprep.subr.mxu0 0.0
    %189 = vmatpush1.xpose.msra.mxu0 0.0
    %190 = vmatprep.subr.mxu0 0.0
    %191 = vmatpush1.xpose.msra.mxu0 0.0
    %192 = vmatprep.subr.mxu0 0.0
    %193 = vmatpush1.xpose.msra.mxu0 0.0
    %194 = vmatprep.subr.mxu0 0.0
    %195 = vmatpush1.xpose.msra.mxu0 0.0
    %196 = vmatprep.subr.mxu0 0.0
    %197 = vmatpush1.xpose.msra.mxu0 0.0
    %198 = vmatprep.subr.mxu0 0.0
    %199 = vmatpush1.xpose.msra.mxu0 0.0
    %200 = vmatprep.subr.mxu0 0.0
    %201 = vmatpush1.xpose.msra.mxu0 0.0
    %202 = vmatprep.subr.mxu0 0.0
    %203 = vmatpush1.xpose.msra.mxu0 0.0
    %204 = vmatprep.subr.mxu0 0.0
    %205 = vmatpush1.xpose.msra.mxu0 0.0
    %206 = vmatprep.subr.mxu0 0.0
    %207 = vmatpush1.xpose.msra.mxu0 0.0
    %208 = vmatprep.subr.mxu0 0.0
    %209 = vmatpush1.xpose.msra.mxu0 0.0
    %210 = vmatprep.subr.mxu0 0.0
    %211 = vmatpush1.xpose.msra.mxu0 0.0
    %212 = vmatprep.subr.mxu0 0.0
    %213 = vmatpush1.xpose.msra.mxu0 0.0
    %214 = vmatprep.subr.mxu0 0.0
    %215 = vmatpush1.xpose.msra.mxu0 0.0
    %216 = vmatprep.subr.mxu0 0.0
    %217 = vmatpush1.xpose.msra.mxu0 0.0
    %218 = vmatprep.subr.mxu0 0.0
    %219 = vmatpush1.xpose.msra.mxu0 0.0
    %220 = vmatprep.subr.mxu0 0.0
    %221 = vmatpush1.xpose.msra.mxu0 0.0
    %222 = vmatprep.subr.mxu0 0.0
    %223 = vmatpush1.xpose.msra.mxu0 0.0
    %224 = vmatprep.subr.mxu0 0.0
    %225 = vmatpush1.xpose.msra.mxu0 0.0
    %226 = vmatprep.subr.mxu0 0.0
    %227 = vmatpush1.xpose.msra.mxu0 0.0
    %228 = vmatprep.subr.mxu0 0.0
    %229 = vmatpush1.xpose.msra.mxu0 0.0
    %230 = vmatprep.mubr.f32.mxu0 0.0
    %231 = vmatmul.mubr.f32.gmra.mrb[0].mxu0 %v161
    %v232 = vpop.f32.mrb[0].mxu0
    %v233 = vadd.f32 0.0, %v232
    %v234 = vpop.f32.mrb[0].mxu0
    %235 = vdwg.mxu0
    %v237 = vsel %vm159, %v155, 0
    %239 = vmatprep.subr.mxu0 0.0
    %240 = vmatpush1.xpose.msra.mxu0 %v237
    %241 = vmatprep.subr.mxu0 0.0
    %242 = vmatpush1.xpose.msra.mxu0 0.0
    %243 = vmatprep.subr.mxu0 0.0
    %244 = vmatpush1.xpose.msra.mxu0 0.0
    %245 = vmatprep.subr.mxu0 0.0
    %246 = vmatpush1.xpose.msra.mxu0 0.0
    %247 = vmatprep.subr.mxu0 0.0
    %248 = vmatpush1.xpose.msra.mxu0 0.0
    %249 = vmatprep.subr.mxu0 0.0
    %250 = vmatpush1.xpose.msra.mxu0 0.0
    %251 = vmatprep.subr.mxu0 0.0
    %252 = vmatpush1.xpose.msra.mxu0 0.0
    %253 = vmatprep.subr.mxu0 0.0
    %254 = vmatpush1.xpose.msra.mxu0 0.0
    %255 = vmatprep.subr.mxu0 0.0
    %256 = vmatpush1.xpose.msra.mxu0 0.0
    %257 = vmatprep.subr.mxu0 0.0
    %258 = vmatpush1.xpose.msra.mxu0 0.0
    %259 = vmatprep.subr.mxu0 0.0
    %260 = vmatpush1.xpose.msra.mxu0 0.0
    %261 = vmatprep.subr.mxu0 0.0
    %262 = vmatpush1.xpose.msra.mxu0 0.0
    %263 = vmatprep.subr.mxu0 0.0
    %264 = vmatpush1.xpose.msra.mxu0 0.0
    %265 = vmatprep.subr.mxu0 0.0
    %266 = vmatpush1.xpose.msra.mxu0 0.0
    %267 = vmatprep.subr.mxu0 0.0
    %268 = vmatpush1.xpose.msra.mxu0 0.0
    %269 = vmatprep.subr.mxu0 0.0
    %270 = vmatpush1.xpose.msra.mxu0 0.0
    %271 = vmatprep.subr.mxu0 0.0
    %272 = vmatpush1.xpose.msra.mxu0 0.0
    %273 = vmatprep.subr.mxu0 0.0
    %274 = vmatpush1.xpose.msra.mxu0 0.0
    %275 = vmatprep.subr.mxu0 0.0
    %276 = vmatpush1.xpose.msra.mxu0 0.0
    %277 = vmatprep.subr.mxu0 0.0
    %278 = vmatpush1.xpose.msra.mxu0 0.0
    %279 = vmatprep.subr.mxu0 0.0
    %280 = vmatpush1.xpose.msra.mxu0 0.0
    %281 = vmatprep.subr.mxu0 0.0
    %282 = vmatpush1.xpose.msra.mxu0 0.0
    %283 = vmatprep.subr.mxu0 0.0
    %284 = vmatpush1.xpose.msra.mxu0 0.0
    %285 = vmatprep.subr.mxu0 0.0
    %286 = vmatpush1.xpose.msra.mxu0 0.0
    %287 = vmatprep.subr.mxu0 0.0
    %288 = vmatpush1.xpose.msra.mxu0 0.0
    %289 = vmatprep.subr.mxu0 0.0
    %290 = vmatpush1.xpose.msra.mxu0 0.0
    %291 = vmatprep.subr.mxu0 0.0
    %292 = vmatpush1.xpose.msra.mxu0 0.0
    %293 = vmatprep.subr.mxu0 0.0
    %294 = vmatpush1.xpose.msra.mxu0 0.0
    %295 = vmatprep.subr.mxu0 0.0
    %296 = vmatpush1.xpose.msra.mxu0 0.0
    %297 = vmatprep.subr.mxu0 0.0
    %298 = vmatpush1.xpose.msra.mxu0 0.0
    %299 = vmatprep.subr.mxu0 0.0
    %300 = vmatpush1.xpose.msra.mxu0 0.0
    %301 = vmatprep.subr.mxu0 0.0
    %302 = vmatpush1.xpose.msra.mxu0 0.0
    %303 = vmatprep.mubr.f32.mxu0 0.0
    %304 = vmatmul.mubr.f32.gmra.mrb[0].mxu0 %v161
    %v305 = vpop.f32.mrb[0].mxu0
    %v306 = vadd.f32 0.0, %v305
    %v307 = vpop.f32.mrb[0].mxu0
    %308 = vdwg.mxu0
    %v310 = vsel %vm159, %v101, 0
    %312 = vmatprep.subr.mxu0 0.0
    %313 = vmatpush1.xpose.msra.mxu0 %v310
    %314 = vmatprep.subr.mxu0 0.0
    %315 = vmatpush1.xpose.msra.mxu0 0.0
    %316 = vmatprep.subr.mxu0 0.0
    %317 = vmatpush1.xpose.msra.mxu0 0.0
    %318 = vmatprep.subr.mxu0 0.0
    %319 = vmatpush1.xpose.msra.mxu0 0.0
    %320 = vmatprep.subr.mxu0 0.0
    %321 = vmatpush1.xpose.msra.mxu0 0.0
    %322 = vmatprep.subr.mxu0 0.0
    %323 = vmatpush1.xpose.msra.mxu0 0.0
    %324 = vmatprep.subr.mxu0 0.0
    %325 = vmatpush1.xpose.msra.mxu0 0.0
    %326 = vmatprep.subr.mxu0 0.0
    %327 = vmatpush1.xpose.msra.mxu0 0.0
    %328 = vmatprep.subr.mxu0 0.0
    %329 = vmatpush1.xpose.msra.mxu0 0.0
    %330 = vmatprep.subr.mxu0 0.0
    %331 = vmatpush1.xpose.msra.mxu0 0.0
    %332 = vmatprep.subr.mxu0 0.0
    %333 = vmatpush1.xpose.msra.mxu0 0.0
    %334 = vmatprep.subr.mxu0 0.0
    %335 = vmatpush1.xpose.msra.mxu0 0.0
    %336 = vmatprep.subr.mxu0 0.0
    %337 = vmatpush1.xpose.msra.mxu0 0.0
    %338 = vmatprep.subr.mxu0 0.0
    %339 = vmatpush1.xpose.msra.mxu0 0.0
    %340 = vmatprep.subr.mxu0 0.0
    %341 = vmatpush1.xpose.msra.mxu0 0.0
    %342 = vmatprep.subr.mxu0 0.0
    %343 = vmatpush1.xpose.msra.mxu0 0.0
    %344 = vmatprep.subr.mxu0 0.0
    %345 = vmatpush1.xpose.msra.mxu0 0.0
    %346 = vmatprep.subr.mxu0 0.0
    %347 = vmatpush1.xpose.msra.mxu0 0.0
    %348 = vmatprep.subr.mxu0 0.0
    %349 = vmatpush1.xpose.msra.mxu0 0.0
    %350 = vmatprep.subr.mxu0 0.0
    %351 = vmatpush1.xpose.msra.mxu0 0.0
    %352 = vmatprep.subr.mxu0 0.0
    %353 = vmatpush1.xpose.msra.mxu0 0.0
    %354 = vmatprep.subr.mxu0 0.0
    %355 = vmatpush1.xpose.msra.mxu0 0.0
    %356 = vmatprep.subr.mxu0 0.0
    %357 = vmatpush1.xpose.msra.mxu0 0.0
    %358 = vmatprep.subr.mxu0 0.0
    %359 = vmatpush1.xpose.msra.mxu0 0.0
    %360 = vmatprep.subr.mxu0 0.0
    %361 = vmatpush1.xpose.msra.mxu0 0.0
    %362 = vmatprep.subr.mxu0 0.0
    %363 = vmatpush1.xpose.msra.mxu0 0.0
    %364 = vmatprep.subr.mxu0 0.0
    %365 = vmatpush1.xpose.msra.mxu0 0.0
    %366 = vmatprep.subr.mxu0 0.0
    %367 = vmatpush1.xpose.msra.mxu0 0.0
    %368 = vmatprep.subr.mxu0 0.0
    %369 = vmatpush1.xpose.msra.mxu0 0.0
    %370 = vmatprep.subr.mxu0 0.0
    %371 = vmatpush1.xpose.msra.mxu0 0.0
    %372 = vmatprep.subr.mxu0 0.0
    %373 = vmatpush1.xpose.msra.mxu0 0.0
    %374 = vmatprep.subr.mxu0 0.0
    %375 = vmatpush1.xpose.msra.mxu0 0.0
    %376 = vmatprep.mubr.f32.mxu0 0.0
    %377 = vmatmul.mubr.f32.gmra.mrb[0].mxu0 %v310
    %v378 = vpop.f32.mrb[0].mxu0
    %v379 = vadd.f32 0.0, %v378
    %v380 = vpop.f32.mrb[0].mxu0
    %381 = vdwg.mxu0
    %v383 = vsel %vm159, %v103, 0
    %385 = vmatprep.subr.mxu0 0.0
    %386 = vmatpush1.xpose.msra.mxu0 %v383
    %387 = vmatprep.subr.mxu0 0.0
    %388 = vmatpush1.xpose.msra.mxu0 0.0
    %389 = vmatprep.subr.mxu0 0.0
    %390 = vmatpush1.xpose.msra.mxu0 0.0
    %391 = vmatprep.subr.mxu0 0.0
    %392 = vmatpush1.xpose.msra.mxu0 0.0
    %393 = vmatprep.subr.mxu0 0.0
    %394 = vmatpush1.xpose.msra.mxu0 0.0
    %395 = vmatprep.subr.mxu0 0.0
    %396 = vmatpush1.xpose.msra.mxu0 0.0
    %397 = vmatprep.subr.mxu0 0.0
    %398 = vmatpush1.xpose.msra.mxu0 0.0
    %399 = vmatprep.subr.mxu0 0.0
    %400 = vmatpush1.xpose.msra.mxu0 0.0
    %401 = vmatprep.subr.mxu0 0.0
    %402 = vmatpush1.xpose.msra.mxu0 0.0
    %403 = vmatprep.subr.mxu0 0.0
    %404 = vmatpush1.xpose.msra.mxu0 0.0
    %405 = vmatprep.subr.mxu0 0.0
    %406 = vmatpush1.xpose.msra.mxu0 0.0
    %407 = vmatprep.subr.mxu0 0.0
    %408 = vmatpush1.xpose.msra.mxu0 0.0
    %409 = vmatprep.subr.mxu0 0.0
    %410 = vmatpush1.xpose.msra.mxu0 0.0
    %411 = vmatprep.subr.mxu0 0.0
    %412 = vmatpush1.xpose.msra.mxu0 0.0
    %413 = vmatprep.subr.mxu0 0.0
    %414 = vmatpush1.xpose.msra.mxu0 0.0
    %415 = vmatprep.subr.mxu0 0.0
    %416 = vmatpush1.xpose.msra.mxu0 0.0
    %417 = vmatprep.subr.mxu0 0.0
    %418 = vmatpush1.xpose.msra.mxu0 0.0
    %419 = vmatprep.subr.mxu0 0.0
    %420 = vmatpush1.xpose.msra.mxu0 0.0
    %421 = vmatprep.subr.mxu0 0.0
    %422 = vmatpush1.xpose.msra.mxu0 0.0
    %423 = vmatprep.subr.mxu0 0.0
    %424 = vmatpush1.xpose.msra.mxu0 0.0
    %425 = vmatprep.subr.mxu0 0.0
    %426 = vmatpush1.xpose.msra.mxu0 0.0
    %427 = vmatprep.subr.mxu0 0.0
    %428 = vmatpush1.xpose.msra.mxu0 0.0
    %429 = vmatprep.subr.mxu0 0.0
    %430 = vmatpush1.xpose.msra.mxu0 0.0
    %431 = vmatprep.subr.mxu0 0.0
    %432 = vmatpush1.xpose.msra.mxu0 0.0
    %433 = vmatprep.subr.mxu0 0.0
    %434 = vmatpush1.xpose.msra.mxu0 0.0
    %435 = vmatprep.subr.mxu0 0.0
    %436 = vmatpush1.xpose.msra.mxu0 0.0
    %437 = vmatprep.subr.mxu0 0.0
    %438 = vmatpush1.xpose.msra.mxu0 0.0
    %439 = vmatprep.subr.mxu0 0.0
    %440 = vmatpush1.xpose.msra.mxu0 0.0
    %441 = vmatprep.subr.mxu0 0.0
    %442 = vmatpush1.xpose.msra.mxu0 0.0
    %443 = vmatprep.subr.mxu0 0.0
    %444 = vmatpush1.xpose.msra.mxu0 0.0
    %445 = vmatprep.subr.mxu0 0.0
    %446 = vmatpush1.xpose.msra.mxu0 0.0
    %447 = vmatprep.subr.mxu0 0.0
    %448 = vmatpush1.xpose.msra.mxu0 0.0
    %449 = vmatprep.mubr.f32.mxu0 0.0
    %450 = vmatmul.mubr.f32.gmra.mrb[0].mxu0 %v310
    %v451 = vpop.f32.mrb[0].mxu0
    %v452 = vadd.f32 0.0, %v451
    %v453 = vpop.f32.mrb[0].mxu0
    %454 = vdwg.mxu0
    %455 = vmatprep.subr.mxu0 0.0
    %456 = vmatpush1.xpose.msra.mxu0 %v310
    %457 = vmatprep.subr.mxu0 0.0
    %458 = vmatpush1.xpose.msra.mxu0 0.0
    %459 = vmatprep.subr.mxu0 0.0
    %460 = vmatpush1.xpose.msra.mxu0 0.0
    %461 = vmatprep.subr.mxu0 0.0
    %462 = vmatpush1.xpose.msra.mxu0 0.0
    %463 = vmatprep.subr.mxu0 0.0
    %464 = vmatpush1.xpose.msra.mxu0 0.0
    %465 = vmatprep.subr.mxu0 0.0
    %466 = vmatpush1.xpose.msra.mxu0 0.0
    %467 = vmatprep.subr.mxu0 0.0
    %468 = vmatpush1.xpose.msra.mxu0 0.0
    %469 = vmatprep.subr.mxu0 0.0
    %470 = vmatpush1.xpose.msra.mxu0 0.0
    %471 = vmatprep.subr.mxu0 0.0
    %472 = vmatpush1.xpose.msra.mxu0 0.0
    %473 = vmatprep.subr.mxu0 0.0
    %474 = vmatpush1.xpose.msra.mxu0 0.0
    %475 = vmatprep.subr.mxu0 0.0
    %476 = vmatpush1.xpose.msra.mxu0 0.0
    %477 = vmatprep.subr.mxu0 0.0
    %478 = vmatpush1.xpose.msra.mxu0 0.0
    %479 = vmatprep.subr.mxu0 0.0
    %480 = vmatpush1.xpose.msra.mxu0 0.0
    %481 = vmatprep.subr.mxu0 0.0
    %482 = vmatpush1.xpose.msra.mxu0 0.0
    %483 = vmatprep.subr.mxu0 0.0
    %484 = vmatpush1.xpose.msra.mxu0 0.0
    %485 = vmatprep.subr.mxu0 0.0
    %486 = vmatpush1.xpose.msra.mxu0 0.0
    %487 = vmatprep.subr.mxu0 0.0
    %488 = vmatpush1.xpose.msra.mxu0 0.0
    %489 = vmatprep.subr.mxu0 0.0
    %490 = vmatpush1.xpose.msra.mxu0 0.0
    %491 = vmatprep.subr.mxu0 0.0
    %492 = vmatpush1.xpose.msra.mxu0 0.0
    %493 = vmatprep.subr.mxu0 0.0
    %494 = vmatpush1.xpose.msra.mxu0 0.0
    %495 = vmatprep.subr.mxu0 0.0
    %496 = vmatpush1.xpose.msra.mxu0 0.0
    %497 = vmatprep.subr.mxu0 0.0
    %498 = vmatpush1.xpose.msra.mxu0 0.0
    %499 = vmatprep.subr.mxu0 0.0
    %500 = vmatpush1.xpose.msra.mxu0 0.0
    %501 = vmatprep.subr.mxu0 0.0
    %502 = vmatpush1.xpose.msra.mxu0 0.0
    %503 = vmatprep.subr.mxu0 0.0
    %504 = vmatpush1.xpose.msra.mxu0 0.0
    %505 = vmatprep.subr.mxu0 0.0
    %506 = vmatpush1.xpose.msra.mxu0 0.0
    %507 = vmatprep.subr.mxu0 0.0
    %508 = vmatpush1.xpose.msra.mxu0 0.0
    %509 = vmatprep.subr.mxu0 0.0
    %510 = vmatpush1.xpose.msra.mxu0 0.0
    %511 = vmatprep.subr.mxu0 0.0
    %512 = vmatpush1.xpose.msra.mxu0 0.0
    %513 = vmatprep.subr.mxu0 0.0
    %514 = vmatpush1.xpose.msra.mxu0 0.0
    %515 = vmatprep.subr.mxu0 0.0
    %516 = vmatpush1.xpose.msra.mxu0 0.0
    %517 = vmatprep.subr.mxu0 0.0
    %518 = vmatpush1.xpose.msra.mxu0 0.0
    %519 = vmatprep.mubr.f32.mxu0 0.0
    %520 = vmatmul.mubr.f32.gmra.mrb[0].mxu0 %v383
    %v521 = vpop.f32.mrb[0].mxu0
    %v522 = vadd.f32 0.0, %v521
    %v523 = vpop.f32.mrb[0].mxu0
    %524 = vdwg.mxu0
    %525 = vmatprep.subr.mxu0 0.0
    %526 = vmatpush1.xpose.msra.mxu0 %v383
    %527 = vmatprep.subr.mxu0 0.0
    %528 = vmatpush1.xpose.msra.mxu0 0.0
    %529 = vmatprep.subr.mxu0 0.0
    %530 = vmatpush1.xpose.msra.mxu0 0.0
    %531 = vmatprep.subr.mxu0 0.0
    %532 = vmatpush1.xpose.msra.mxu0 0.0
    %533 = vmatprep.subr.mxu0 0.0
    %534 = vmatpush1.xpose.msra.mxu0 0.0
    %535 = vmatprep.subr.mxu0 0.0
    %536 = vmatpush1.xpose.msra.mxu0 0.0
    %537 = vmatprep.subr.mxu0 0.0
    %538 = vmatpush1.xpose.msra.mxu0 0.0
    %539 = vmatprep.subr.mxu0 0.0
    %540 = vmatpush1.xpose.msra.mxu0 0.0
    %541 = vmatprep.subr.mxu0 0.0
    %542 = vmatpush1.xpose.msra.mxu0 0.0
    %543 = vmatprep.subr.mxu0 0.0
    %544 = vmatpush1.xpose.msra.mxu0 0.0
    %545 = vmatprep.subr.mxu0 0.0
    %546 = vmatpush1.xpose.msra.mxu0 0.0
    %547 = vmatprep.subr.mxu0 0.0
    %548 = vmatpush1.xpose.msra.mxu0 0.0
    %549 = vmatprep.subr.mxu0 0.0
    %550 = vmatpush1.xpose.msra.mxu0 0.0
    %551 = vmatprep.subr.mxu0 0.0
    %552 = vmatpush1.xpose.msra.mxu0 0.0
    %553 = vmatprep.subr.mxu0 0.0
    %554 = vmatpush1.xpose.msra.mxu0 0.0
    %555 = vmatprep.subr.mxu0 0.0
    %556 = vmatpush1.xpose.msra.mxu0 0.0
    %557 = vmatprep.subr.mxu0 0.0
    %558 = vmatpush1.xpose.msra.mxu0 0.0
    %559 = vmatprep.subr.mxu0 0.0
    %560 = vmatpush1.xpose.msra.mxu0 0.0
    %561 = vmatprep.subr.mxu0 0.0
    %562 = vmatpush1.xpose.msra.mxu0 0.0
    %563 = vmatprep.subr.mxu0 0.0
    %564 = vmatpush1.xpose.msra.mxu0 0.0
    %565 = vmatprep.subr.mxu0 0.0
    %566 = vmatpush1.xpose.msra.mxu0 0.0
    %567 = vmatprep.subr.mxu0 0.0
    %568 = vmatpush1.xpose.msra.mxu0 0.0
    %569 = vmatprep.subr.mxu0 0.0
    %570 = vmatpush1.xpose.msra.mxu0 0.0
    %571 = vmatprep.subr.mxu0 0.0
    %572 = vmatpush1.xpose.msra.mxu0 0.0
    %573 = vmatprep.subr.mxu0 0.0
    %574 = vmatpush1.xpose.msra.mxu0 0.0
    %575 = vmatprep.subr.mxu0 0.0
    %576 = vmatpush1.xpose.msra.mxu0 0.0
    %577 = vmatprep.subr.mxu0 0.0
    %578 = vmatpush1.xpose.msra.mxu0 0.0
    %579 = vmatprep.subr.mxu0 0.0
    %580 = vmatpush1.xpose.msra.mxu0 0.0
    %581 = vmatprep.subr.mxu0 0.0
    %582 = vmatpush1.xpose.msra.mxu0 0.0
    %583 = vmatprep.subr.mxu0 0.0
    %584 = vmatpush1.xpose.msra.mxu0 0.0
    %585 = vmatprep.subr.mxu0 0.0
    %586 = vmatpush1.xpose.msra.mxu0 0.0
    %587 = vmatprep.subr.mxu0 0.0
    %588 = vmatpush1.xpose.msra.mxu0 0.0
    %589 = vmatprep.mubr.f32.mxu0 0.0
    %590 = vmatmul.mubr.f32.gmra.mrb[0].mxu0 %v383
    %v591 = vpop.f32.mrb[0].mxu0
    %v592 = vadd.f32 0.0, %v591
    %v593 = vpop.f32.mrb[0].mxu0
    %594 = vdwg.mxu0
    %v595 = vlaneseq
    %v596 = vshrl.u32 %v595, 7
    %v597 = vlaneseq
    %v598 = vand.u32 %v597, 127
    %vm599 = vcmp.ne.s32.totalorder %v596, %v598
    %v600 = vsel %vm599, 1, 0
    %v601 = vcvt.s32.f32 %v600
    %v602 = vlaneseq
    %v603 = vshrl.u32 %v602, 7
    %v604 = vsub.s32 0, %v603
    %v605 = vrot.slane %v233, %v604
    %v606 = vadd.f32 %v154, %v605
    %v607 = vmul.f32 %v379, 2.0
    %v608 = vsub.f32 %v606, %v607
    %v609 = vmax.f32 %v608, 0.0
    %v610 = vrsqrt.pop %v609
    %v611 = vmul.f32 %v609, %v610
    %vm612 = vcmp.eq.f32.partialorder %v609, inf
    %v613 = vsel %vm612, %v609, %v611
    %vm614 = vcmp.eq.f32.partialorder %v609, 0.0
    %v615 = vand.u32 %v609, 2147483648
    %v616 = vsel %vm614, %v615, %v613
    %v617 = vmul.f32 %v616, %v601
    %v618 = vlaneseq
    %v619 = vshrl.u32 %v618, 7
    %v620 = vsub.s32 0, %v619
    %v621 = vrot.slane %v306, %v620
    %v622 = vadd.f32 %v154, %v621
    %v623 = vmul.f32 %v452, 2.0
    %v624 = vsub.f32 %v622, %v623
    %v625 = vmax.f32 %v624, 0.0
    %v626 = vrsqrt.pop %v625
    %v627 = vmul.f32 %v625, %v626
    %vm628 = vcmp.eq.f32.partialorder %v625, inf
    %v629 = vsel %vm628, %v625, %v627
    %vm630 = vcmp.eq.f32.partialorder %v625, 0.0
    %v631 = vand.u32 %v625, 2147483648
    %v632 = vsel %vm630, %v631, %v629
    %v633 = vadd.f32 %v158, %v605
    %v634 = vmul.f32 %v522, 2.0
    %v635 = vsub.f32 %v633, %v634
    %v636 = vmax.f32 %v635, 0.0
    %v637 = vrsqrt.pop %v636
    %v638 = vmul.f32 %v636, %v637
    %vm639 = vcmp.eq.f32.partialorder %v636, inf
    %v640 = vsel %vm639, %v636, %v638
    %vm641 = vcmp.eq.f32.partialorder %v636, 0.0
    %v642 = vand.u32 %v636, 2147483648
    %v643 = vsel %vm641, %v642, %v640
    %v644 = vadd.f32 %v158, %v621
    %v645 = vmul.f32 %v592, 2.0
    %v646 = vsub.f32 %v644, %v645
    %v647 = vmax.f32 %v646, 0.0
    %v648 = vrsqrt.pop %v647
    %v649 = vmul.f32 %v647, %v648
    %vm650 = vcmp.eq.f32.partialorder %v647, inf
    %v651 = vsel %vm650, %v647, %v649
    %vm652 = vcmp.eq.f32.partialorder %v647, 0.0
    %v653 = vand.u32 %v647, 2147483648
    %v654 = vsel %vm652, %v653, %v651
    %v655 = vmul.f32 %v654, %v601
    %v656 = vld [vmem:[%s1] sm:$0xf]
    %658 = vset.pattern.permute.xlu0 0
    %659 = vperm.xlu0 %658, %v656
    %v660 = vpop.permute.xlu0 %659
    %v662 = vlaneseq
    %v663 = vshrl.u32 %v662, 7
    %v664 = vsub.s32 2, %v663
    %v665 = vrot.slane %v18, %v664
    %vm666 = vcmp.eq.f32.partialorder %v660, %v665
    %v667 = vsel %vm666, 1, 0
    %v668 = vcvt.s32.f32 %v667
    %v669 = vsub.f32 1.0, %v668
    %v670 = vmul.f32 %v617, %v668
    %vm671 = vcmp.eq.f32.partialorder %v670, 0.0
    %v672 = vsel %vm671, 1e+09, %v670
    %v673 = vsel %vm113, %v672, inf
    %674 = vmin.xlane.f32.xlu0 %v673
    %v675 = vpop.xlane.xlu0 %674
    %v676 = vmul.f32 %v632, %v668
    %vm677 = vcmp.eq.f32.partialorder %v676, 0.0
    %v678 = vsel %vm677, 1e+09, %v676
    %v679 = vsel %vm113, %v678, inf
    %680 = vmin.xlane.f32.xlu0 %v679
    %v681 = vpop.xlane.xlu0 %680
    %v682 = vmin.f32 %v675, %v681
    %v683 = vmul.f32 %v617, %v669
    %vm684 = vcmp.eq.f32.partialorder %v683, 0.0
    %v685 = vsel %vm684, 1e+09, %v683
    %v686 = vsel %vm113, %v685, inf
    %687 = vmin.xlane.f32.xlu0 %v686
    %v688 = vpop.xlane.xlu0 %687
    %v689 = vmul.f32 %v632, %v669
    %vm690 = vcmp.eq.f32.partialorder %v689, 0.0
    %v691 = vsel %vm690, 1e+09, %v689
    %v692 = vsel %vm113, %v691, inf
    %693 = vmin.xlane.f32.xlu0 %v692
    %v694 = vpop.xlane.xlu0 %693
    %v695 = vmin.f32 %v688, %v694
    %v696 = vmul.f32 %v643, %v668
    %vm697 = vcmp.eq.f32.partialorder %v696, 0.0
    %v698 = vsel %vm697, 1e+09, %v696
    %v699 = vsel %vm113, %v698, inf
    %700 = vmin.xlane.f32.xlu0 %v699
    %v701 = vpop.xlane.xlu0 %700
    %v702 = vmul.f32 %v655, %v668
    %vm703 = vcmp.eq.f32.partialorder %v702, 0.0
    %v704 = vsel %vm703, 1e+09, %v702
    %v705 = vsel %vm113, %v704, inf
    %706 = vmin.xlane.f32.xlu0 %v705
    %v707 = vpop.xlane.xlu0 %706
    %v708 = vmin.f32 %v701, %v707
    %v709 = vmul.f32 %v643, %v669
    %vm710 = vcmp.eq.f32.partialorder %v709, 0.0
    %v711 = vsel %vm710, 1e+09, %v709
    %v712 = vsel %vm113, %v711, inf
    %713 = vmin.xlane.f32.xlu0 %v712
    %v714 = vpop.xlane.xlu0 %713
    %v715 = vmul.f32 %v655, %v669
    %vm716 = vcmp.eq.f32.partialorder %v715, 0.0
    %v717 = vsel %vm716, 1e+09, %v715
    %v718 = vsel %vm113, %v717, inf
    %719 = vmin.xlane.f32.xlu0 %v718
    %v720 = vpop.xlane.xlu0 %719
    %v721 = vmin.f32 %v714, %v720
    %v722 = vsub.f32 %v682, %v695
    %v723 = vadd.f32 %v722, 0.5
    %v724 = vmax.f32 %v723, 0.0
    %v725 = vsub.f32 %v708, %v721
    %v726 = vadd.f32 %v725, 0.5
    %v727 = vmax.f32 %v726, 0.0
    %vm728 = vcmp.lt.f32.partialorder %v682, 1e+08
    %vm729 = vcmp.lt.f32.partialorder %v695, 1e+08
    %vm730 = vmand %vm728, %vm729
    %v731 = vsel %vm730, 1, 0
    %v732 = vcvt.s32.f32 %v731
    %vm733 = vcmp.lt.f32.partialorder %v708, 1e+08
    %vm734 = vcmp.lt.f32.partialorder %v721, 1e+08
    %vm735 = vmand %vm733, %vm734
    %v736 = vsel %vm735, 1, 0
    %v737 = vcvt.s32.f32 %v736
    %v738 = vsel %vm138, %v732, 0.0
    %739 = vadd.xlane.f32.xlu0 %v738
    %v740 = vpop.xlane.xlu0 %739
    %v741 = vrot.slane %v740, 4
    %v742 = vadd.f32 %v740, %v741
    %v743 = vrot.slane %v742, 2
    %v744 = vadd.f32 %v742, %v743
    %v745 = vrot.slane %v744, 1
    %v746 = vadd.f32 %v744, %v745
    %s747 = vtos %v746
    %v748 = vstv %s747
    %v749 = vsel %vm138, %v737, 0.0
    %750 = vadd.xlane.f32.xlu0 %v749
    %v751 = vpop.xlane.xlu0 %750
    %v752 = vrot.slane %v751, 4
    %v753 = vadd.f32 %v751, %v752
    %v754 = vrot.slane %v753, 2
    %v755 = vadd.f32 %v753, %v754
    %v756 = vrot.slane %v755, 1
    %v757 = vadd.f32 %v755, %v756
    %s758 = vtos %v757
    %v759 = vstv %s758
    %v760 = vadd.f32 %v748, %v759
    %v761 = vmul.f32 %v724, %v732
    %v762 = vsel %vm138, %v761, 0.0
    %763 = vadd.xlane.f32.xlu0 %v762
    %v764 = vpop.xlane.xlu0 %763
    %v765 = vrot.slane %v764, 4
    %v766 = vadd.f32 %v764, %v765
    %v767 = vrot.slane %v766, 2
    %v768 = vadd.f32 %v766, %v767
    %v769 = vrot.slane %v768, 1
    %v770 = vadd.f32 %v768, %v769
    %s771 = vtos %v770
    %v772 = vstv %s771
    %v773 = vmul.f32 %v727, %v737
    %v774 = vsel %vm138, %v773, 0.0
    %775 = vadd.xlane.f32.xlu0 %v774
    %v776 = vpop.xlane.xlu0 %775
    %v777 = vrot.slane %v776, 4
    %v778 = vadd.f32 %v776, %v777
    %v779 = vrot.slane %v778, 2
    %v780 = vadd.f32 %v778, %v779
    %v781 = vrot.slane %v780, 1
    %v782 = vadd.f32 %v780, %v781
    %s783 = vtos %v782
    %v784 = vstv %s783
    %v785 = vadd.f32 %v772, %v784
    %vm786 = vcmp.gt.f32.partialorder %v760, 0.0
    %v787 = vmax.f32 %v760, 1.0
    %v788 = vrcp.pop %v787
    %v789 = vmul.f32 %v785, %v788
    %v790 = vsel %vm786, %v789, 0.0
    %v791 = vld [vmem:[%s3] sm:$0xf]
    %vm792 = vcmask 122880
    %v793 = vsel %vm792, %v791, 0.0
    %794 = vadd.xlane.f32.xlu0 %v793
    %v795 = vpop.xlane.xlu0 %794
    %v796 = vmul.f32 %v795, 0.00024414063
    %vm797 = vcmask 123905
    %v798 = vsel %vm797, %v791, 0.0
    %799 = vadd.xlane.f32.xlu0 %v798
    %v800 = vpop.xlane.xlu0 %799
    %v801 = vmul.f32 %v800, 0.00024414063
    %v803 = vrot.slane %v801, 1
    %v805 = vadd.f32 %v796, %v803
    %v806 = vmul.f32 %v805, 0.5
    %vm807 = vcmp.eq.f32.partialorder %v18, 1.0
    %v808 = vsel %vm807, 1, 0
    %v809 = vcvt.s32.f32 %v808
    %v811 = vrot.slane %v809, 2
    %v813 = vsel %vm59, %v811, 0.0
    %814 = vadd.xlane.f32.xlu0 %v813
    %v815 = vpop.xlane.xlu0 %814
    %v816 = vrot.slane %v815, 4
    %v817 = vadd.f32 %v815, %v816
    %v818 = vrot.slane %v817, 2
    %v819 = vadd.f32 %v817, %v818
    %v820 = vrot.slane %v819, 1
    %v821 = vadd.f32 %v819, %v820
    %s822 = vtos %v821
    %v823 = vstv %s822
    %vm824 = vcmp.gt.f32.partialorder %v823, 0.0
    %vm825 = vcmp.eq.f32.partialorder %v18, 0.0
    %v826 = vsel %vm825, 1, 0
    %v827 = vcvt.s32.f32 %v826
    %v829 = vrot.slane %v827, 2
    %v831 = vsel %vm59, %v829, 0.0
    %832 = vadd.xlane.f32.xlu0 %v831
    %v833 = vpop.xlane.xlu0 %832
    %v834 = vrot.slane %v833, 4
    %v835 = vadd.f32 %v833, %v834
    %v836 = vrot.slane %v835, 2
    %v837 = vadd.f32 %v835, %v836
    %v838 = vrot.slane %v837, 1
    %v839 = vadd.f32 %v837, %v838
    %s840 = vtos %v839
    %v841 = vstv %s840
    %vm842 = vcmp.gt.f32.partialorder %v841, 0.0
    %vm843 = vmand %vm824, %vm842
    %v844 = vmul.f32 %v100, 0.5
    %v845 = vmul.f32 %v790, 0.3
    %v846 = vadd.f32 %v844, %v845
    %v847 = vmul.f32 %v150, 0.3
    %v848 = vadd.f32 %v846, %v847
    %v849 = vmul.f32 %v806, 0.2
    %v850 = vadd.f32 %v848, %v849
    %v851 = vsel %vm843, %v850, 0.0
    %v852 = vadd.f32 %v72, %v851
    %vm853 = vcmask 0
    %854 = vst.msk [vmem:[#allocation2] sm:$0x1] %vm853, %v852
    // Predicated region
    $region18: #{enhanced_contrastive_loss.3} parent=1 // pred_check
      _
    $region19: #{enhanced_contrastive_loss.3} parent=1 // pred_check_branch
      %856 = sbr.rel (0) target = $region21
    $region20: #{enhanced_contrastive_loss.3} parent=1 // pred_region
      %s858 = ssub.s32 16, 16
      %859 = vsyncadd [#allocation3], %s858
      %s861 = sshll.u32 [#allocation2], 4
      %s862 = int_to_ptr.vmem [resolvable:$true] %s861
      %864 = dma.vmem_to_hbm [thread:$0]  %s862, 16, %s4, [#allocation3]
    $region21: #{enhanced_contrastive_loss.3} parent=1 // pred_fallthru
      _
    // Predicated region
    $region22: #{enhanced_contrastive_loss.3} parent=1 // pred_check
      _
    $region23: #{enhanced_contrastive_loss.3} parent=1 // pred_check_branch
      %866 = sbr.rel (0) target = $region25
    $region24: #{enhanced_contrastive_loss.3} parent=1 // pred_region
      %867 = dma.done [#allocation3], 16
    $region25: #{enhanced_contrastive_loss.3} parent=1 // pred_fallthru
      _
    %868 = vsyncpa [#allocation3], 1

</llo_original>
